<compile_context>
chip_gen: v5e
topology: v5e:2x2
jax: 0.10.0
libtpu: 0.0.40
codegen_flags: <defaults>
</compile_context>

<pallas_src>
import jax
import jax.numpy as jnp
from jax.experimental import pallas as pl
from jax.experimental.pallas import tpu as pltpu

# Small synthetic config (ninp == nhid so every layer's input width matches).
RNN_TYPE = "LSTM"
NTOKEN = 32
NINP = 32
NHID = 32
NLAYERS = 2
SEQ = 8
BATCH = 2
VPAD = 128  # decoder output padded to a full 128-lane tile (unmasked stores)

assert NINP == NHID, "stacked LSTM feeds NHID back as the next layer's input"


def _sigmoid(x):
    # EUP-only sigmoid (tanh), avoids a per-gate VALU divide sequence.
    return 0.5 * jnp.tanh(0.5 * x) + 0.5


def _lstm_decoder_kernel(emb_ref, h0_ref, c0_ref, wih_ref, whh_ref, b_ref,
                         decw_ref, decb_ref,
                         dec_ref, hn_ref, cn_ref, seq_buf):
    # seq_buf (SEQ*BATCH, NHID): current layer's input sequence, overwritten in
    # place with that layer's output (out[t] depends only on in[t], h[t-1]).
    seq_buf[...] = emb_ref[...]

    for l in range(NLAYERS):
        # Loop-invariant loads, hoisted once per layer.
        w_ih = wih_ref[l]            # (NINP, 4H)
        w_hh = whh_ref[l]            # (NHID, 4H)
        bias = b_ref[l]              # (1, 4H) == b_ih + b_hh, pre-folded

        # Input projection for the whole sequence in ONE MXU op, off the
        # serial recurrence path: (S*B, NINP) @ (NINP, 4H) + bias.
        x_all = seq_buf[...]
        ih_all = jnp.dot(x_all, w_ih, preferred_element_type=jnp.float32) + bias

        # h / c live in vregs across the fully-unrolled time loop.
        h = h0_ref[l]                # (B, NHID)
        c = c0_ref[l]                # (B, NHID)

        for t in range(SEQ):         # SEQ=8: static unroll (LLO scheduler sees it)
            # Single fused (B, 4H) recurrent matmul per step.
            gates = (ih_all[t * BATCH:(t + 1) * BATCH, :]
                     + jnp.dot(h, w_hh, preferred_element_type=jnp.float32))
            i_g = _sigmoid(gates[:, 0 * NHID:1 * NHID])
            f_g = _sigmoid(gates[:, 1 * NHID:2 * NHID])
            g_g = jnp.tanh(gates[:, 2 * NHID:3 * NHID])
            o_g = _sigmoid(gates[:, 3 * NHID:4 * NHID])
            c = f_g * c + i_g * g_g
            h = o_g * jnp.tanh(c)
            # Layer output writeback (off the critical recurrence path).
            seq_buf[t * BATCH:(t + 1) * BATCH, :] = h

        hn_ref[l] = h
        cn_ref[l] = c

    # Decoder: one (S*B, H) @ (H, VPAD) matmul; output is lane-dense (128-wide),
    # so the store is an unmasked vst. Vocab un-padding happens in the wrapper.
    dec_ref[...] = (jnp.dot(seq_buf[...], decw_ref[...],
                            preferred_element_type=jnp.float32) + decb_ref[...])


@jax.jit
def rnn_model_forward(tokens, h0, c0, params):
    emb_table, wih_k, whh_k, b_k, decw_k, decb_k = params
    # Embedding lookup (glue): (S, B) int32 -> (S*B, NINP).
    emb = emb_table[tokens].reshape(SEQ * BATCH, NINP)
    # Dropout(p=0.5) treated as identity (eval mode).
    # TODO(synk): training-mode stochastic dropout not implemented.
    vmem = pl.BlockSpec(memory_space=pltpu.MemorySpace.VMEM)
    dec_flat, h_n, c_n = pl.pallas_call(
        _lstm_decoder_kernel,
        out_shape=(
            jax.ShapeDtypeStruct((SEQ * BATCH, VPAD), jnp.float32),
            jax.ShapeDtypeStruct((NLAYERS, BATCH, NHID), jnp.float32),
            jax.ShapeDtypeStruct((NLAYERS, BATCH, NHID), jnp.float32),
        ),
        in_specs=[vmem] * 8,
        out_specs=(vmem, vmem, vmem),
        scratch_shapes=[
            pltpu.VMEM((SEQ * BATCH, NHID), jnp.float32),  # layer in/out sequence
        ],
        compiler_params=pltpu.CompilerParams(vmem_limit_bytes=32 * 1024 * 1024),
    )(emb, h0, c0, wih_k, whh_k, b_k, decw_k, decb_k)
    # Un-pad vocab and restore (S, B, V) — wrapper-side layout plumbing only.
    decoded = dec_flat[:, :NTOKEN].reshape(SEQ, BATCH, NTOKEN)
    return decoded, (h_n, c_n)


def init_params(key):
    """Deterministic init matching RNNModel.init_weights + PyTorch LSTM defaults."""
    ks = jax.random.split(key, 6)
    initrange = 0.1
    emb_table = jax.random.uniform(ks[0], (NTOKEN, NINP), jnp.float32, -initrange, initrange)
    stdv = 1.0 / (NHID ** 0.5)
    # PyTorch layout: weight_ih_l: (4H, in), weight_hh_l: (4H, H), gate order i,f,g,o.
    wih = jax.random.uniform(ks[1], (NLAYERS, 4 * NHID, NINP), jnp.float32, -stdv, stdv)
    whh = jax.random.uniform(ks[2], (NLAYERS, 4 * NHID, NHID), jnp.float32, -stdv, stdv)
    bih = jax.random.uniform(ks[3], (NLAYERS, 4 * NHID), jnp.float32, -stdv, stdv)
    bhh = jax.random.uniform(ks[4], (NLAYERS, 4 * NHID), jnp.float32, -stdv, stdv)
    decw = jax.random.uniform(ks[5], (NTOKEN, NHID), jnp.float32, -initrange, initrange)
    decb = jnp.zeros((NTOKEN,), jnp.float32)

    # Kernel layouts: pre-transposed so the kernel computes x @ W with the
    # i|f|g|o gates contiguous along the lane axis -> (B, 4H) = (B, 128) dense.
    wih_k = wih.transpose(0, 2, 1)                       # (L, NINP, 4H)
    whh_k = whh.transpose(0, 2, 1)                       # (L, NHID, 4H)
    b_k = (bih + bhh).reshape(NLAYERS, 1, 4 * NHID)      # fused bias (L, 1, 4H)
    # Decoder pre-transposed and vocab padded to a full 128-lane tile.
    decw_k = jnp.zeros((NHID, VPAD), jnp.float32).at[:, :NTOKEN].set(decw.T)
    decb_k = jnp.zeros((1, VPAD), jnp.float32).at[:, :NTOKEN].set(decb)

    kernel_params = (emb_table, wih_k, whh_k, b_k, decw_k, decb_k)
    torch_layout = (emb_table, wih, whh, bih, bhh, decw, decb)
    return kernel_params, torch_layout


def reference_forward(tokens, h0, c0, torch_params):
    """Pure-JAX reference with PyTorch weight layouts (eval-mode dropout)."""
    emb_table, wih, whh, bih, bhh, decw, decb = torch_params

    def sig(x):
        return 1.0 / (1.0 + jnp.exp(-x))

    x = emb_table[tokens]
    hs, cs = [], []
    for l in range(NLAYERS):
        h, c = h0[l], c0[l]
        outs = []
        for t in range(SEQ):
            gates = x[t] @ wih[l].T + bih[l] + h @ whh[l].T + bhh[l]
            i_g = sig(gates[:, 0 * NHID:1 * NHID])
            f_g = sig(gates[:, 1 * NHID:2 * NHID])
            g_g = jnp.tanh(gates[:, 2 * NHID:3 * NHID])
            o_g = sig(gates[:, 3 * NHID:4 * NHID])
            c = f_g * c + i_g * g_g
            h = o_g * jnp.tanh(c)
            outs.append(h)
        x = jnp.stack(outs, axis=0)
        hs.append(h)
        cs.append(c)
    dec = x.reshape(SEQ * BATCH, NHID) @ decw.T + decb
    return dec.reshape(SEQ, BATCH, NTOKEN), jnp.stack(hs), jnp.stack(cs)


if __name__ == "__main__":
    key = jax.random.PRNGKey(0)
    k_param, k_tok, k_h, k_c = jax.random.split(key, 4)
    kernel_params, torch_params = init_params(k_param)

    tokens = jax.random.randint(k_tok, (SEQ, BATCH), 0, NTOKEN, dtype=jnp.int32)
    h0 = 0.1 * jax.random.normal(k_h, (NLAYERS, BATCH, NHID), jnp.float32)
    c0 = 0.1 * jax.random.normal(k_c, (NLAYERS, BATCH, NHID), jnp.float32)

    decoded, (h_n, c_n) = rnn_model_forward(tokens, h0, c0, kernel_params)
    jax.block_until_ready((decoded, h_n, c_n))

    ref_dec, ref_h, ref_c = reference_forward(tokens, h0, c0, torch_params)
    assert decoded.shape == (SEQ, BATCH, NTOKEN)
    assert h_n.shape == (NLAYERS, BATCH, NHID) and c_n.shape == (NLAYERS, BATCH, NHID)
    assert jnp.allclose(decoded, ref_dec, atol=1e-3, rtol=1e-3)
    assert jnp.allclose(h_n, ref_h, atol=1e-3, rtol=1e-3)
    assert jnp.allclose(c_n, ref_c, atol=1e-3, rtol=1e-3)
    print("KERNEL_OK")
</pallas_src>

<mosaic_0001>
module attributes {stable_mosaic.version = 11 : i64} {
  func.func @_lstm_decoder_kernel(%arg0: memref<16x32xf32, #tpu.memory_space<vmem>>, %arg1: memref<2x2x32xf32, #tpu.memory_space<vmem>>, %arg2: memref<2x2x32xf32, #tpu.memory_space<vmem>>, %arg3: memref<2x32x128xf32, #tpu.memory_space<vmem>>, %arg4: memref<2x32x128xf32, #tpu.memory_space<vmem>>, %arg5: memref<2x1x128xf32, #tpu.memory_space<vmem>>, %arg6: memref<32x128xf32, #tpu.memory_space<vmem>>, %arg7: memref<1x128xf32, #tpu.memory_space<vmem>>, %arg8: memref<16x128xf32, #tpu.memory_space<vmem>>, %arg9: memref<2x2x32xf32, #tpu.memory_space<vmem>>, %arg10: memref<2x2x32xf32, #tpu.memory_space<vmem>>, %arg11: memref<16x32xf32, #tpu.memory_space<vmem>>) attributes {dimension_semantics = [], scalar_prefetch = 0 : i64, scratch_operands = 1 : i64, tpu.core_type = #tpu.core_type<tc>} {
    %c0 = arith.constant 0 : index
    %c0_0 = arith.constant 0 : index
    %0 = vector.load %arg0[%c0, %c0_0] : memref<16x32xf32, #tpu.memory_space<vmem>>, vector<16x32xf32>
    %c0_1 = arith.constant 0 : index
    %c0_2 = arith.constant 0 : index
    %1 = vector.load %arg11[%c0_1, %c0_2] : memref<16x32xf32, #tpu.memory_space<vmem>>, vector<16x32xf32>
    tpu.vector_store %arg11[%c0_1, %c0_2], %0 {strides = array<i32>} : memref<16x32xf32, #tpu.memory_space<vmem>>, vector<16x32xf32>,
    %c0_3 = arith.constant 0 : index
    %c0_4 = arith.constant 0 : index
    %c0_5 = arith.constant 0 : index
    %2 = vector.load %arg3[%c0_3, %c0_4, %c0_5] : memref<2x32x128xf32, #tpu.memory_space<vmem>>, vector<1x32x128xf32>
    %3 = vector.shape_cast %2 : vector<1x32x128xf32> to vector<32x128xf32>
    %c0_6 = arith.constant 0 : index
    %c0_7 = arith.constant 0 : index
    %c0_8 = arith.constant 0 : index
    %4 = vector.load %arg4[%c0_6, %c0_7, %c0_8] : memref<2x32x128xf32, #tpu.memory_space<vmem>>, vector<1x32x128xf32>
    %5 = vector.shape_cast %4 : vector<1x32x128xf32> to vector<32x128xf32>
    %c0_9 = arith.constant 0 : index
    %c0_10 = arith.constant 0 : index
    %c0_11 = arith.constant 0 : index
    %6 = vector.load %arg5[%c0_9, %c0_10, %c0_11] : memref<2x1x128xf32, #tpu.memory_space<vmem>>, vector<1x1x128xf32>
    %7 = vector.shape_cast %6 : vector<1x1x128xf32> to vector<1x128xf32>
    %c0_12 = arith.constant 0 : index
    %c0_13 = arith.constant 0 : index
    %8 = vector.load %arg11[%c0_12, %c0_13] : memref<16x32xf32, #tpu.memory_space<vmem>>, vector<16x32xf32>
    %cst = arith.constant dense<0.000000e+00> : vector<16x128xf32>
    %9 = tpu.matmul %8, %3, %cst {dimension_numbers = #tpu.dot_dimension_numbers<[1], [0], [0], [1], [0, 0, 1, 1], [], []>} : vector<16x32xf32>, vector<32x128xf32>, vector<16x128xf32> -> vector<16x128xf32>
    %10 = vector.broadcast %7 : vector<1x128xf32> to vector<16x128xf32>
    %11 = arith.addf %9, %10 : vector<16x128xf32>
    %c0_14 = arith.constant 0 : index
    %c0_15 = arith.constant 0 : index
    %c0_16 = arith.constant 0 : index
    %12 = vector.load %arg1[%c0_14, %c0_15, %c0_16] : memref<2x2x32xf32, #tpu.memory_space<vmem>>, vector<1x2x32xf32>
    %13 = vector.shape_cast %12 : vector<1x2x32xf32> to vector<2x32xf32>
    %c0_17 = arith.constant 0 : index
    %c0_18 = arith.constant 0 : index
    %c0_19 = arith.constant 0 : index
    %14 = vector.load %arg2[%c0_17, %c0_18, %c0_19] : memref<2x2x32xf32, #tpu.memory_space<vmem>>, vector<1x2x32xf32>
    %15 = vector.shape_cast %14 : vector<1x2x32xf32> to vector<2x32xf32>
    %16 = vector.extract_strided_slice %11 {offsets = [0, 0], sizes = [2, 128], strides = [1, 1]} : vector<16x128xf32> to vector<2x128xf32>
    %cst_20 = arith.constant dense<0.000000e+00> : vector<2x128xf32>
    %17 = tpu.matmul %13, %5, %cst_20 {dimension_numbers = #tpu.dot_dimension_numbers<[1], [0], [0], [1], [0, 0, 1, 1], [], []>} : vector<2x32xf32>, vector<32x128xf32>, vector<2x128xf32> -> vector<2x128xf32>
    %18 = arith.addf %16, %17 : vector<2x128xf32>
    %19 = vector.extract_strided_slice %18 {offsets = [0, 0], sizes = [2, 32], strides = [1, 1]} : vector<2x128xf32> to vector<2x32xf32>
    %cst_21 = arith.constant 5.000000e-01 : f32
    %20 = vector.broadcast %cst_21 : f32 to vector<2x32xf32>
    %21 = arith.mulf %20, %19 : vector<2x32xf32>
    %22 = math.tanh %21 : vector<2x32xf32>
    %cst_22 = arith.constant 5.000000e-01 : f32
    %23 = vector.broadcast %cst_22 : f32 to vector<2x32xf32>
    %24 = arith.mulf %23, %22 : vector<2x32xf32>
    %cst_23 = arith.constant 5.000000e-01 : f32
    %25 = vector.broadcast %cst_23 : f32 to vector<2x32xf32>
    %26 = arith.addf %24, %25 : vector<2x32xf32>
    %27 = vector.extract_strided_slice %18 {offsets = [0, 32], sizes = [2, 32], strides = [1, 1]} : vector<2x128xf32> to vector<2x32xf32>
    %cst_24 = arith.constant 5.000000e-01 : f32
    %28 = vector.broadcast %cst_24 : f32 to vector<2x32xf32>
    %29 = arith.mulf %28, %27 : vector<2x32xf32>
    %30 = math.tanh %29 : vector<2x32xf32>
    %cst_25 = arith.constant 5.000000e-01 : f32
    %31 = vector.broadcast %cst_25 : f32 to vector<2x32xf32>
    %32 = arith.mulf %31, %30 : vector<2x32xf32>
    %cst_26 = arith.constant 5.000000e-01 : f32
    %33 = vector.broadcast %cst_26 : f32 to vector<2x32xf32>
    %34 = arith.addf %32, %33 : vector<2x32xf32>
    %35 = vector.extract_strided_slice %18 {offsets = [0, 64], sizes = [2, 32], strides = [1, 1]} : vector<2x128xf32> to vector<2x32xf32>
    %36 = math.tanh %35 : vector<2x32xf32>
    %37 = vector.extract_strided_slice %18 {offsets = [0, 96], sizes = [2, 32], strides = [1, 1]} : vector<2x128xf32> to vector<2x32xf32>
    %cst_27 = arith.constant 5.000000e-01 : f32
    %38 = vector.broadcast %cst_27 : f32 to vector<2x32xf32>
    %39 = arith.mulf %38, %37 : vector<2x32xf32>
    %40 = math.tanh %39 : vector<2x32xf32>
    %cst_28 = arith.constant 5.000000e-01 : f32
    %41 = vector.broadcast %cst_28 : f32 to vector<2x32xf32>
    %42 = arith.mulf %41, %40 : vector<2x32xf32>
    %cst_29 = arith.constant 5.000000e-01 : f32
    %43 = vector.broadcast %cst_29 : f32 to vector<2x32xf32>
    %44 = arith.addf %42, %43 : vector<2x32xf32>
    %45 = arith.mulf %34, %15 : vector<2x32xf32>
    %46 = arith.mulf %26, %36 : vector<2x32xf32>
    %47 = arith.addf %45, %46 : vector<2x32xf32>
    %48 = math.tanh %47 : vector<2x32xf32>
    %49 = arith.mulf %44, %48 : vector<2x32xf32>
    %c0_30 = arith.constant 0 : index
    %c0_31 = arith.constant 0 : index
    %50 = vector.load %arg11[%c0_30, %c0_31] : memref<16x32xf32, #tpu.memory_space<vmem>>, vector<2x32xf32>
    tpu.vector_store %arg11[%c0_30, %c0_31], %49 {strides = array<i32>} : memref<16x32xf32, #tpu.memory_space<vmem>>, vector<2x32xf32>,
    %51 = vector.extract_strided_slice %11 {offsets = [2, 0], sizes = [2, 128], strides = [1, 1]} : vector<16x128xf32> to vector<2x128xf32>
    %cst_32 = arith.constant dense<0.000000e+00> : vector<2x128xf32>
    %52 = tpu.matmul %49, %5, %cst_32 {dimension_numbers = #tpu.dot_dimension_numbers<[1], [0], [0], [1], [0, 0, 1, 1], [], []>} : vector<2x32xf32>, vector<32x128xf32>, vector<2x128xf32> -> vector<2x128xf32>
    %53 = arith.addf %51, %52 : vector<2x128xf32>
    %54 = vector.extract_strided_slice %53 {offsets = [0, 0], sizes = [2, 32], strides = [1, 1]} : vector<2x128xf32> to vector<2x32xf32>
    %cst_33 = arith.constant 5.000000e-01 : f32
    %55 = vector.broadcast %cst_33 : f32 to vector<2x32xf32>
    %56 = arith.mulf %55, %54 : vector<2x32xf32>
    %57 = math.tanh %56 : vector<2x32xf32>
    %cst_34 = arith.constant 5.000000e-01 : f32
    %58 = vector.broadcast %cst_34 : f32 to vector<2x32xf32>
    %59 = arith.mulf %58, %57 : vector<2x32xf32>
    %cst_35 = arith.constant 5.000000e-01 : f32
    %60 = vector.broadcast %cst_35 : f32 to vector<2x32xf32>
    %61 = arith.addf %59, %60 : vector<2x32xf32>
    %62 = vector.extract_strided_slice %53 {offsets = [0, 32], sizes = [2, 32], strides = [1, 1]} : vector<2x128xf32> to vector<2x32xf32>
    %cst_36 = arith.constant 5.000000e-01 : f32
    %63 = vector.broadcast %cst_36 : f32 to vector<2x32xf32>
    %64 = arith.mulf %63, %62 : vector<2x32xf32>
    %65 = math.tanh %64 : vector<2x32xf32>
    %cst_37 = arith.constant 5.000000e-01 : f32
    %66 = vector.broadcast %cst_37 : f32 to vector<2x32xf32>
    %67 = arith.mulf %66, %65 : vector<2x32xf32>
    %cst_38 = arith.constant 5.000000e-01 : f32
    %68 = vector.broadcast %cst_38 : f32 to vector<2x32xf32>
    %69 = arith.addf %67, %68 : vector<2x32xf32>
    %70 = vector.extract_strided_slice %53 {offsets = [0, 64], sizes = [2, 32], strides = [1, 1]} : vector<2x128xf32> to vector<2x32xf32>
    %71 = math.tanh %70 : vector<2x32xf32>
    %72 = vector.extract_strided_slice %53 {offsets = [0, 96], sizes = [2, 32], strides = [1, 1]} : vector<2x128xf32> to vector<2x32xf32>
    %cst_39 = arith.constant 5.000000e-01 : f32
    %73 = vector.broadcast %cst_39 : f32 to vector<2x32xf32>
    %74 = arith.mulf %73, %72 : vector<2x32xf32>
    %75 = math.tanh %74 : vector<2x32xf32>
    %cst_40 = arith.constant 5.000000e-01 : f32
    %76 = vector.broadcast %cst_40 : f32 to vector<2x32xf32>
    %77 = arith.mulf %76, %75 : vector<2x32xf32>
    %cst_41 = arith.constant 5.000000e-01 : f32
    %78 = vector.broadcast %cst_41 : f32 to vector<2x32xf32>
    %79 = arith.addf %77, %78 : vector<2x32xf32>
    %80 = arith.mulf %69, %47 : vector<2x32xf32>
    %81 = arith.mulf %61, %71 : vector<2x32xf32>
    %82 = arith.addf %80, %81 : vector<2x32xf32>
    %83 = math.tanh %82 : vector<2x32xf32>
    %84 = arith.mulf %79, %83 : vector<2x32xf32>
    %c2 = arith.constant 2 : index
    %c0_42 = arith.constant 0 : index
    %85 = vector.load %arg11[%c2, %c0_42] : memref<16x32xf32, #tpu.memory_space<vmem>>, vector<2x32xf32>
    tpu.vector_store %arg11[%c2, %c0_42], %84 {strides = array<i32>} : memref<16x32xf32, #tpu.memory_space<vmem>>, vector<2x32xf32>,
    %86 = vector.extract_strided_slice %11 {offsets = [4, 0], sizes = [2, 128], strides = [1, 1]} : vector<16x128xf32> to vector<2x128xf32>
    %cst_43 = arith.constant dense<0.000000e+00> : vector<2x128xf32>
    %87 = tpu.matmul %84, %5, %cst_43 {dimension_numbers = #tpu.dot_dimension_numbers<[1], [0], [0], [1], [0, 0, 1, 1], [], []>} : vector<2x32xf32>, vector<32x128xf32>, vector<2x128xf32> -> vector<2x128xf32>
    %88 = arith.addf %86, %87 : vector<2x128xf32>
    %89 = vector.extract_strided_slice %88 {offsets = [0, 0], sizes = [2, 32], strides = [1, 1]} : vector<2x128xf32> to vector<2x32xf32>
    %cst_44 = arith.constant 5.000000e-01 : f32
    %90 = vector.broadcast %cst_44 : f32 to vector<2x32xf32>
    %91 = arith.mulf %90, %89 : vector<2x32xf32>
    %92 = math.tanh %91 : vector<2x32xf32>
    %cst_45 = arith.constant 5.000000e-01 : f32
    %93 = vector.broadcast %cst_45 : f32 to vector<2x32xf32>
    %94 = arith.mulf %93, %92 : vector<2x32xf32>
    %cst_46 = arith.constant 5.000000e-01 : f32
    %95 = vector.broadcast %cst_46 : f32 to vector<2x32xf32>
    %96 = arith.addf %94, %95 : vector<2x32xf32>
    %97 = vector.extract_strided_slice %88 {offsets = [0, 32], sizes = [2, 32], strides = [1, 1]} : vector<2x128xf32> to vector<2x32xf32>
    %cst_47 = arith.constant 5.000000e-01 : f32
    %98 = vector.broadcast %cst_47 : f32 to vector<2x32xf32>
    %99 = arith.mulf %98, %97 : vector<2x32xf32>
    %100 = math.tanh %99 : vector<2x32xf32>
    %cst_48 = arith.constant 5.000000e-01 : f32
    %101 = vector.broadcast %cst_48 : f32 to vector<2x32xf32>
    %102 = arith.mulf %101, %100 : vector<2x32xf32>
    %cst_49 = arith.constant 5.000000e-01 : f32
    %103 = vector.broadcast %cst_49 : f32 to vector<2x32xf32>
    %104 = arith.addf %102, %103 : vector<2x32xf32>
    %105 = vector.extract_strided_slice %88 {offsets = [0, 64], sizes = [2, 32], strides = [1, 1]} : vector<2x128xf32> to vector<2x32xf32>
    %106 = math.tanh %105 : vector<2x32xf32>
    %107 = vector.extract_strided_slice %88 {offsets = [0, 96], sizes = [2, 32], strides = [1, 1]} : vector<2x128xf32> to vector<2x32xf32>
    %cst_50 = arith.constant 5.000000e-01 : f32
    %108 = vector.broadcast %cst_50 : f32 to vector<2x32xf32>
    %109 = arith.mulf %108, %107 : vector<2x32xf32>
    %110 = math.tanh %109 : vector<2x32xf32>
    %cst_51 = arith.constant 5.000000e-01 : f32
    %111 = vector.broadcast %cst_51 : f32 to vector<2x32xf32>
    %112 = arith.mulf %111, %110 : vector<2x32xf32>
    %cst_52 = arith.constant 5.000000e-01 : f32
    %113 = vector.broadcast %cst_52 : f32 to vector<2x32xf32>
    %114 = arith.addf %112, %113 : vector<2x32xf32>
    %115 = arith.mulf %104, %82 : vector<2x32xf32>
    %116 = arith.mulf %96, %106 : vector<2x32xf32>
    %117 = arith.addf %115, %116 : vector<2x32xf32>
    %118 = math.tanh %117 : vector<2x32xf32>
    %119 = arith.mulf %114, %118 : vector<2x32xf32>
    %c4 = arith.constant 4 : index
    %c0_53 = arith.constant 0 : index
    %120 = vector.load %arg11[%c4, %c0_53] : memref<16x32xf32, #tpu.memory_space<vmem>>, vector<2x32xf32>
    tpu.vector_store %arg11[%c4, %c0_53], %119 {strides = array<i32>} : memref<16x32xf32, #tpu.memory_space<vmem>>, vector<2x32xf32>,
    %121 = vector.extract_strided_slice %11 {offsets = [6, 0], sizes = [2, 128], strides = [1, 1]} : vector<16x128xf32> to vector<2x128xf32>
    %cst_54 = arith.constant dense<0.000000e+00> : vector<2x128xf32>
    %122 = tpu.matmul %119, %5, %cst_54 {dimension_numbers = #tpu.dot_dimension_numbers<[1], [0], [0], [1], [0, 0, 1, 1], [], []>} : vector<2x32xf32>, vector<32x128xf32>, vector<2x128xf32> -> vector<2x128xf32>
    %123 = arith.addf %121, %122 : vector<2x128xf32>
    %124 = vector.extract_strided_slice %123 {offsets = [0, 0], sizes = [2, 32], strides = [1, 1]} : vector<2x128xf32> to vector<2x32xf32>
    %cst_55 = arith.constant 5.000000e-01 : f32
    %125 = vector.broadcast %cst_55 : f32 to vector<2x32xf32>
    %126 = arith.mulf %125, %124 : vector<2x32xf32>
    %127 = math.tanh %126 : vector<2x32xf32>
    %cst_56 = arith.constant 5.000000e-01 : f32
    %128 = vector.broadcast %cst_56 : f32 to vector<2x32xf32>
    %129 = arith.mulf %128, %127 : vector<2x32xf32>
    %cst_57 = arith.constant 5.000000e-01 : f32
    %130 = vector.broadcast %cst_57 : f32 to vector<2x32xf32>
    %131 = arith.addf %129, %130 : vector<2x32xf32>
    %132 = vector.extract_strided_slice %123 {offsets = [0, 32], sizes = [2, 32], strides = [1, 1]} : vector<2x128xf32> to vector<2x32xf32>
    %cst_58 = arith.constant 5.000000e-01 : f32
    %133 = vector.broadcast %cst_58 : f32 to vector<2x32xf32>
    %134 = arith.mulf %133, %132 : vector<2x32xf32>
    %135 = math.tanh %134 : vector<2x32xf32>
    %cst_59 = arith.constant 5.000000e-01 : f32
    %136 = vector.broadcast %cst_59 : f32 to vector<2x32xf32>
    %137 = arith.mulf %136, %135 : vector<2x32xf32>
    %cst_60 = arith.constant 5.000000e-01 : f32
    %138 = vector.broadcast %cst_60 : f32 to vector<2x32xf32>
    %139 = arith.addf %137, %138 : vector<2x32xf32>
    %140 = vector.extract_strided_slice %123 {offsets = [0, 64], sizes = [2, 32], strides = [1, 1]} : vector<2x128xf32> to vector<2x32xf32>
    %141 = math.tanh %140 : vector<2x32xf32>
    %142 = vector.extract_strided_slice %123 {offsets = [0, 96], sizes = [2, 32], strides = [1, 1]} : vector<2x128xf32> to vector<2x32xf32>
    %cst_61 = arith.constant 5.000000e-01 : f32
    %143 = vector.broadcast %cst_61 : f32 to vector<2x32xf32>
    %144 = arith.mulf %143, %142 : vector<2x32xf32>
    %145 = math.tanh %144 : vector<2x32xf32>
    %cst_62 = arith.constant 5.000000e-01 : f32
    %146 = vector.broadcast %cst_62 : f32 to vector<2x32xf32>
    %147 = arith.mulf %146, %145 : vector<2x32xf32>
    %cst_63 = arith.constant 5.000000e-01 : f32
    %148 = vector.broadcast %cst_63 : f32 to vector<2x32xf32>
    %149 = arith.addf %147, %148 : vector<2x32xf32>
    %150 = arith.mulf %139, %117 : vector<2x32xf32>
    %151 = arith.mulf %131, %141 : vector<2x32xf32>
    %152 = arith.addf %150, %151 : vector<2x32xf32>
    %153 = math.tanh %152 : vector<2x32xf32>
    %154 = arith.mulf %149, %153 : vector<2x32xf32>
    %c6 = arith.constant 6 : index
    %c0_64 = arith.constant 0 : index
    %155 = vector.load %arg11[%c6, %c0_64] : memref<16x32xf32, #tpu.memory_space<vmem>>, vector<2x32xf32>
    tpu.vector_store %arg11[%c6, %c0_64], %154 {strides = array<i32>} : memref<16x32xf32, #tpu.memory_space<vmem>>, vector<2x32xf32>,
    %156 = vector.extract_strided_slice %11 {offsets = [8, 0], sizes = [2, 128], strides = [1, 1]} : vector<16x128xf32> to vector<2x128xf32>
    %cst_65 = arith.constant dense<0.000000e+00> : vector<2x128xf32>
    %157 = tpu.matmul %154, %5, %cst_65 {dimension_numbers = #tpu.dot_dimension_numbers<[1], [0], [0], [1], [0, 0, 1, 1], [], []>} : vector<2x32xf32>, vector<32x128xf32>, vector<2x128xf32> -> vector<2x128xf32>
    %158 = arith.addf %156, %157 : vector<2x128xf32>
    %159 = vector.extract_strided_slice %158 {offsets = [0, 0], sizes = [2, 32], strides = [1, 1]} : vector<2x128xf32> to vector<2x32xf32>
    %cst_66 = arith.constant 5.000000e-01 : f32
    %160 = vector.broadcast %cst_66 : f32 to vector<2x32xf32>
    %161 = arith.mulf %160, %159 : vector<2x32xf32>
    %162 = math.tanh %161 : vector<2x32xf32>
    %cst_67 = arith.constant 5.000000e-01 : f32
    %163 = vector.broadcast %cst_67 : f32 to vector<2x32xf32>
    %164 = arith.mulf %163, %162 : vector<2x32xf32>
    %cst_68 = arith.constant 5.000000e-01 : f32
    %165 = vector.broadcast %cst_68 : f32 to vector<2x32xf32>
    %166 = arith.addf %164, %165 : vector<2x32xf32>
    %167 = vector.extract_strided_slice %158 {offsets = [0, 32], sizes = [2, 32], strides = [1, 1]} : vector<2x128xf32> to vector<2x32xf32>
    %cst_69 = arith.constant 5.000000e-01 : f32
    %168 = vector.broadcast %cst_69 : f32 to vector<2x32xf32>
    %169 = arith.mulf %168, %167 : vector<2x32xf32>
    %170 = math.tanh %169 : vector<2x32xf32>
    %cst_70 = arith.constant 5.000000e-01 : f32
    %171 = vector.broadcast %cst_70 : f32 to vector<2x32xf32>
    %172 = arith.mulf %171, %170 : vector<2x32xf32>
    %cst_71 = arith.constant 5.000000e-01 : f32
    %173 = vector.broadcast %cst_71 : f32 to vector<2x32xf32>
    %174 = arith.addf %172, %173 : vector<2x32xf32>
    %175 = vector.extract_strided_slice %158 {offsets = [0, 64], sizes = [2, 32], strides = [1, 1]} : vector<2x128xf32> to vector<2x32xf32>
    %176 = math.tanh %175 : vector<2x32xf32>
    %177 = vector.extract_strided_slice %158 {offsets = [0, 96], sizes = [2, 32], strides = [1, 1]} : vector<2x128xf32> to vector<2x32xf32>
    %cst_72 = arith.constant 5.000000e-01 : f32
    %178 = vector.broadcast %cst_72 : f32 to vector<2x32xf32>
    %179 = arith.mulf %178, %177 : vector<2x32xf32>
    %180 = math.tanh %179 : vector<2x32xf32>
    %cst_73 = arith.constant 5.000000e-01 : f32
    %181 = vector.broadcast %cst_73 : f32 to vector<2x32xf32>
    %182 = arith.mulf %181, %180 : vector<2x32xf32>
    %cst_74 = arith.constant 5.000000e-01 : f32
    %183 = vector.broadcast %cst_74 : f32 to vector<2x32xf32>
    %184 = arith.addf %182, %183 : vector<2x32xf32>
    %185 = arith.mulf %174, %152 : vector<2x32xf32>
    %186 = arith.mulf %166, %176 : vector<2x32xf32>
    %187 = arith.addf %185, %186 : vector<2x32xf32>
    %188 = math.tanh %187 : vector<2x32xf32>
    %189 = arith.mulf %184, %188 : vector<2x32xf32>
    %c8 = arith.constant 8 : index
    %c0_75 = arith.constant 0 : index
    %190 = vector.load %arg11[%c8, %c0_75] : memref<16x32xf32, #tpu.memory_space<vmem>>, vector<2x32xf32>
    tpu.vector_store %arg11[%c8, %c0_75], %189 {strides = array<i32>} : memref<16x32xf32, #tpu.memory_space<vmem>>, vector<2x32xf32>,
    %191 = vector.extract_strided_slice %11 {offsets = [10, 0], sizes = [2, 128], strides = [1, 1]} : vector<16x128xf32> to vector<2x128xf32>
    %cst_76 = arith.constant dense<0.000000e+00> : vector<2x128xf32>
    %192 = tpu.matmul %189, %5, %cst_76 {dimension_numbers = #tpu.dot_dimension_numbers<[1], [0], [0], [1], [0, 0, 1, 1], [], []>} : vector<2x32xf32>, vector<32x128xf32>, vector<2x128xf32> -> vector<2x128xf32>
    %193 = arith.addf %191, %192 : vector<2x128xf32>
    %194 = vector.extract_strided_slice %193 {offsets = [0, 0], sizes = [2, 32], strides = [1, 1]} : vector<2x128xf32> to vector<2x32xf32>
    %cst_77 = arith.constant 5.000000e-01 : f32
    %195 = vector.broadcast %cst_77 : f32 to vector<2x32xf32>
    %196 = arith.mulf %195, %194 : vector<2x32xf32>
    %197 = math.tanh %196 : vector<2x32xf32>
    %cst_78 = arith.constant 5.000000e-01 : f32
    %198 = vector.broadcast %cst_78 : f32 to vector<2x32xf32>
    %199 = arith.mulf %198, %197 : vector<2x32xf32>
    %cst_79 = arith.constant 5.000000e-01 : f32
    %200 = vector.broadcast %cst_79 : f32 to vector<2x32xf32>
    %201 = arith.addf %199, %200 : vector<2x32xf32>
    %202 = vector.extract_strided_slice %193 {offsets = [0, 32], sizes = [2, 32], strides = [1, 1]} : vector<2x128xf32> to vector<2x32xf32>
    %cst_80 = arith.constant 5.000000e-01 : f32
    %203 = vector.broadcast %cst_80 : f32 to vector<2x32xf32>
    %204 = arith.mulf %203, %202 : vector<2x32xf32>
    %205 = math.tanh %204 : vector<2x32xf32>
    %cst_81 = arith.constant 5.000000e-01 : f32
    %206 = vector.broadcast %cst_81 : f32 to vector<2x32xf32>
    %207 = arith.mulf %206, %205 : vector<2x32xf32>
    %cst_82 = arith.constant 5.000000e-01 : f32
    %208 = vector.broadcast %cst_82 : f32 to vector<2x32xf32>
    %209 = arith.addf %207, %208 : vector<2x32xf32>
    %210 = vector.extract_strided_slice %193 {offsets = [0, 64], sizes = [2, 32], strides = [1, 1]} : vector<2x128xf32> to vector<2x32xf32>
    %211 = math.tanh %210 : vector<2x32xf32>
    %212 = vector.extract_strided_slice %193 {offsets = [0, 96], sizes = [2, 32], strides = [1, 1]} : vector<2x128xf32> to vector<2x32xf32>
    %cst_83 = arith.constant 5.000000e-01 : f32
    %213 = vector.broadcast %cst_83 : f32 to vector<2x32xf32>
    %214 = arith.mulf %213, %212 : vector<2x32xf32>
    %215 = math.tanh %214 : vector<2x32xf32>
    %cst_84 = arith.constant 5.000000e-01 : f32
    %216 = vector.broadcast %cst_84 : f32 to vector<2x32xf32>
    %217 = arith.mulf %216, %215 : vector<2x32xf32>
    %cst_85 = arith.constant 5.000000e-01 : f32
    %218 = vector.broadcast %cst_85 : f32 to vector<2x32xf32>
    %219 = arith.addf %217, %218 : vector<2x32xf32>
    %220 = arith.mulf %209, %187 : vector<2x32xf32>
    %221 = arith.mulf %201, %211 : vector<2x32xf32>
    %222 = arith.addf %220, %221 : vector<2x32xf32>
    %223 = math.tanh %222 : vector<2x32xf32>
    %224 = arith.mulf %219, %223 : vector<2x32xf32>
    %c10 = arith.constant 10 : index
    %c0_86 = arith.constant 0 : index
    %225 = vector.load %arg11[%c10, %c0_86] : memref<16x32xf32, #tpu.memory_space<vmem>>, vector<2x32xf32>
    tpu.vector_store %arg11[%c10, %c0_86], %224 {strides = array<i32>} : memref<16x32xf32, #tpu.memory_space<vmem>>, vector<2x32xf32>,
    %226 = vector.extract_strided_slice %11 {offsets = [12, 0], sizes = [2, 128], strides = [1, 1]} : vector<16x128xf32> to vector<2x128xf32>
    %cst_87 = arith.constant dense<0.000000e+00> : vector<2x128xf32>
    %227 = tpu.matmul %224, %5, %cst_87 {dimension_numbers = #tpu.dot_dimension_numbers<[1], [0], [0], [1], [0, 0, 1, 1], [], []>} : vector<2x32xf32>, vector<32x128xf32>, vector<2x128xf32> -> vector<2x128xf32>
    %228 = arith.addf %226, %227 : vector<2x128xf32>
    %229 = vector.extract_strided_slice %228 {offsets = [0, 0], sizes = [2, 32], strides = [1, 1]} : vector<2x128xf32> to vector<2x32xf32>
    %cst_88 = arith.constant 5.000000e-01 : f32
    %230 = vector.broadcast %cst_88 : f32 to vector<2x32xf32>
    %231 = arith.mulf %230, %229 : vector<2x32xf32>
    %232 = math.tanh %231 : vector<2x32xf32>
    %cst_89 = arith.constant 5.000000e-01 : f32
    %233 = vector.broadcast %cst_89 : f32 to vector<2x32xf32>
    %234 = arith.mulf %233, %232 : vector<2x32xf32>
    %cst_90 = arith.constant 5.000000e-01 : f32
    %235 = vector.broadcast %cst_90 : f32 to vector<2x32xf32>
    %236 = arith.addf %234, %235 : vector<2x32xf32>
    %237 = vector.extract_strided_slice %228 {offsets = [0, 32], sizes = [2, 32], strides = [1, 1]} : vector<2x128xf32> to vector<2x32xf32>
    %cst_91 = arith.constant 5.000000e-01 : f32
    %238 = vector.broadcast %cst_91 : f32 to vector<2x32xf32>
    %239 = arith.mulf %238, %237 : vector<2x32xf32>
    %240 = math.tanh %239 : vector<2x32xf32>
    %cst_92 = arith.constant 5.000000e-01 : f32
    %241 = vector.broadcast %cst_92 : f32 to vector<2x32xf32>
    %242 = arith.mulf %241, %240 : vector<2x32xf32>
    %cst_93 = arith.constant 5.000000e-01 : f32
    %243 = vector.broadcast %cst_93 : f32 to vector<2x32xf32>
    %244 = arith.addf %242, %243 : vector<2x32xf32>
    %245 = vector.extract_strided_slice %228 {offsets = [0, 64], sizes = [2, 32], strides = [1, 1]} : vector<2x128xf32> to vector<2x32xf32>
    %246 = math.tanh %245 : vector<2x32xf32>
    %247 = vector.extract_strided_slice %228 {offsets = [0, 96], sizes = [2, 32], strides = [1, 1]} : vector<2x128xf32> to vector<2x32xf32>
    %cst_94 = arith.constant 5.000000e-01 : f32
    %248 = vector.broadcast %cst_94 : f32 to vector<2x32xf32>
    %249 = arith.mulf %248, %247 : vector<2x32xf32>
    %250 = math.tanh %249 : vector<2x32xf32>
    %cst_95 = arith.constant 5.000000e-01 : f32
    %251 = vector.broadcast %cst_95 : f32 to vector<2x32xf32>
    %252 = arith.mulf %251, %250 : vector<2x32xf32>
    %cst_96 = arith.constant 5.000000e-01 : f32
    %253 = vector.broadcast %cst_96 : f32 to vector<2x32xf32>
    %254 = arith.addf %252, %253 : vector<2x32xf32>
    %255 = arith.mulf %244, %222 : vector<2x32xf32>
    %256 = arith.mulf %236, %246 : vector<2x32xf32>
    %257 = arith.addf %255, %256 : vector<2x32xf32>
    %258 = math.tanh %257 : vector<2x32xf32>
    %259 = arith.mulf %254, %258 : vector<2x32xf32>
    %c12 = arith.constant 12 : index
    %c0_97 = arith.constant 0 : index
    %260 = vector.load %arg11[%c12, %c0_97] : memref<16x32xf32, #tpu.memory_space<vmem>>, vector<2x32xf32>
    tpu.vector_store %arg11[%c12, %c0_97], %259 {strides = array<i32>} : memref<16x32xf32, #tpu.memory_space<vmem>>, vector<2x32xf32>,
    %261 = vector.extract_strided_slice %11 {offsets = [14, 0], sizes = [2, 128], strides = [1, 1]} : vector<16x128xf32> to vector<2x128xf32>
    %cst_98 = arith.constant dense<0.000000e+00> : vector<2x128xf32>
    %262 = tpu.matmul %259, %5, %cst_98 {dimension_numbers = #tpu.dot_dimension_numbers<[1], [0], [0], [1], [0, 0, 1, 1], [], []>} : vector<2x32xf32>, vector<32x128xf32>, vector<2x128xf32> -> vector<2x128xf32>
    %263 = arith.addf %261, %262 : vector<2x128xf32>
    %264 = vector.extract_strided_slice %263 {offsets = [0, 0], sizes = [2, 32], strides = [1, 1]} : vector<2x128xf32> to vector<2x32xf32>
    %cst_99 = arith.constant 5.000000e-01 : f32
    %265 = vector.broadcast %cst_99 : f32 to vector<2x32xf32>
    %266 = arith.mulf %265, %264 : vector<2x32xf32>
    %267 = math.tanh %266 : vector<2x32xf32>
    %cst_100 = arith.constant 5.000000e-01 : f32
    %268 = vector.broadcast %cst_100 : f32 to vector<2x32xf32>
    %269 = arith.mulf %268, %267 : vector<2x32xf32>
    %cst_101 = arith.constant 5.000000e-01 : f32
    %270 = vector.broadcast %cst_101 : f32 to vector<2x32xf32>
    %271 = arith.addf %269, %270 : vector<2x32xf32>
    %272 = vector.extract_strided_slice %263 {offsets = [0, 32], sizes = [2, 32], strides = [1, 1]} : vector<2x128xf32> to vector<2x32xf32>
    %cst_102 = arith.constant 5.000000e-01 : f32
    %273 = vector.broadcast %cst_102 : f32 to vector<2x32xf32>
    %274 = arith.mulf %273, %272 : vector<2x32xf32>
    %275 = math.tanh %274 : vector<2x32xf32>
    %cst_103 = arith.constant 5.000000e-01 : f32
    %276 = vector.broadcast %cst_103 : f32 to vector<2x32xf32>
    %277 = arith.mulf %276, %275 : vector<2x32xf32>
    %cst_104 = arith.constant 5.000000e-01 : f32
    %278 = vector.broadcast %cst_104 : f32 to vector<2x32xf32>
    %279 = arith.addf %277, %278 : vector<2x32xf32>
    %280 = vector.extract_strided_slice %263 {offsets = [0, 64], sizes = [2, 32], strides = [1, 1]} : vector<2x128xf32> to vector<2x32xf32>
    %281 = math.tanh %280 : vector<2x32xf32>
    %282 = vector.extract_strided_slice %263 {offsets = [0, 96], sizes = [2, 32], strides = [1, 1]} : vector<2x128xf32> to vector<2x32xf32>
    %cst_105 = arith.constant 5.000000e-01 : f32
    %283 = vector.broadcast %cst_105 : f32 to vector<2x32xf32>
    %284 = arith.mulf %283, %282 : vector<2x32xf32>
    %285 = math.tanh %284 : vector<2x32xf32>
    %cst_106 = arith.constant 5.000000e-01 : f32
    %286 = vector.broadcast %cst_106 : f32 to vector<2x32xf32>
    %287 = arith.mulf %286, %285 : vector<2x32xf32>
    %cst_107 = arith.constant 5.000000e-01 : f32
    %288 = vector.broadcast %cst_107 : f32 to vector<2x32xf32>
    %289 = arith.addf %287, %288 : vector<2x32xf32>
    %290 = arith.mulf %279, %257 : vector<2x32xf32>
    %291 = arith.mulf %271, %281 : vector<2x32xf32>
    %292 = arith.addf %290, %291 : vector<2x32xf32>
    %293 = math.tanh %292 : vector<2x32xf32>
    %294 = arith.mulf %289, %293 : vector<2x32xf32>
    %c14 = arith.constant 14 : index
    %c0_108 = arith.constant 0 : index
    %295 = vector.load %arg11[%c14, %c0_108] : memref<16x32xf32, #tpu.memory_space<vmem>>, vector<2x32xf32>
    tpu.vector_store %arg11[%c14, %c0_108], %294 {strides = array<i32>} : memref<16x32xf32, #tpu.memory_space<vmem>>, vector<2x32xf32>,
    %c0_109 = arith.constant 0 : index
    %c0_110 = arith.constant 0 : index
    %c0_111 = arith.constant 0 : index
    %296 = vector.load %arg9[%c0_109, %c0_110, %c0_111] : memref<2x2x32xf32, #tpu.memory_space<vmem>>, vector<1x2x32xf32>
    %297 = vector.shape_cast %296 : vector<1x2x32xf32> to vector<2x32xf32>
    %298 = vector.shape_cast %294 : vector<2x32xf32> to vector<1x2x32xf32>
    tpu.vector_store %arg9[%c0_109, %c0_110, %c0_111], %298 {strides = array<i32>} : memref<2x2x32xf32, #tpu.memory_space<vmem>>, vector<1x2x32xf32>,
    %c0_112 = arith.constant 0 : index
    %c0_113 = arith.constant 0 : index
    %c0_114 = arith.constant 0 : index
    %299 = vector.load %arg10[%c0_112, %c0_113, %c0_114] : memref<2x2x32xf32, #tpu.memory_space<vmem>>, vector<1x2x32xf32>
    %300 = vector.shape_cast %299 : vector<1x2x32xf32> to vector<2x32xf32>
    %301 = vector.shape_cast %292 : vector<2x32xf32> to vector<1x2x32xf32>
    tpu.vector_store %arg10[%c0_112, %c0_113, %c0_114], %301 {strides = array<i32>} : memref<2x2x32xf32, #tpu.memory_space<vmem>>, vector<1x2x32xf32>,
    %c1 = arith.constant 1 : index
    %c0_115 = arith.constant 0 : index
    %c0_116 = arith.constant 0 : index
    %302 = vector.load %arg3[%c1, %c0_115, %c0_116] : memref<2x32x128xf32, #tpu.memory_space<vmem>>, vector<1x32x128xf32>
    %303 = vector.shape_cast %302 : vector<1x32x128xf32> to vector<32x128xf32>
    %c1_117 = arith.constant 1 : index
    %c0_118 = arith.constant 0 : index
    %c0_119 = arith.constant 0 : index
    %304 = vector.load %arg4[%c1_117, %c0_118, %c0_119] : memref<2x32x128xf32, #tpu.memory_space<vmem>>, vector<1x32x128xf32>
    %305 = vector.shape_cast %304 : vector<1x32x128xf32> to vector<32x128xf32>
    %c1_120 = arith.constant 1 : index
    %c0_121 = arith.constant 0 : index
    %c0_122 = arith.constant 0 : index
    %306 = vector.load %arg5[%c1_120, %c0_121, %c0_122] : memref<2x1x128xf32, #tpu.memory_space<vmem>>, vector<1x1x128xf32>
    %307 = vector.shape_cast %306 : vector<1x1x128xf32> to vector<1x128xf32>
    %c0_123 = arith.constant 0 : index
    %c0_124 = arith.constant 0 : index
    %308 = vector.load %arg11[%c0_123, %c0_124] : memref<16x32xf32, #tpu.memory_space<vmem>>, vector<16x32xf32>
    %cst_125 = arith.constant dense<0.000000e+00> : vector<16x128xf32>
    %309 = tpu.matmul %308, %303, %cst_125 {dimension_numbers = #tpu.dot_dimension_numbers<[1], [0], [0], [1], [0, 0, 1, 1], [], []>} : vector<16x32xf32>, vector<32x128xf32>, vector<16x128xf32> -> vector<16x128xf32>
    %310 = vector.broadcast %307 : vector<1x128xf32> to vector<16x128xf32>
    %311 = arith.addf %309, %310 : vector<16x128xf32>
    %c1_126 = arith.constant 1 : index
    %c0_127 = arith.constant 0 : index
    %c0_128 = arith.constant 0 : index
    %312 = vector.load %arg1[%c1_126, %c0_127, %c0_128] : memref<2x2x32xf32, #tpu.memory_space<vmem>>, vector<1x2x32xf32>
    %313 = vector.shape_cast %312 : vector<1x2x32xf32> to vector<2x32xf32>
    %c1_129 = arith.constant 1 : index
    %c0_130 = arith.constant 0 : index
    %c0_131 = arith.constant 0 : index
    %314 = vector.load %arg2[%c1_129, %c0_130, %c0_131] : memref<2x2x32xf32, #tpu.memory_space<vmem>>, vector<1x2x32xf32>
    %315 = vector.shape_cast %314 : vector<1x2x32xf32> to vector<2x32xf32>
    %316 = vector.extract_strided_slice %311 {offsets = [0, 0], sizes = [2, 128], strides = [1, 1]} : vector<16x128xf32> to vector<2x128xf32>
    %cst_132 = arith.constant dense<0.000000e+00> : vector<2x128xf32>
    %317 = tpu.matmul %313, %305, %cst_132 {dimension_numbers = #tpu.dot_dimension_numbers<[1], [0], [0], [1], [0, 0, 1, 1], [], []>} : vector<2x32xf32>, vector<32x128xf32>, vector<2x128xf32> -> vector<2x128xf32>
    %318 = arith.addf %316, %317 : vector<2x128xf32>
    %319 = vector.extract_strided_slice %318 {offsets = [0, 0], sizes = [2, 32], strides = [1, 1]} : vector<2x128xf32> to vector<2x32xf32>
    %cst_133 = arith.constant 5.000000e-01 : f32
    %320 = vector.broadcast %cst_133 : f32 to vector<2x32xf32>
    %321 = arith.mulf %320, %319 : vector<2x32xf32>
    %322 = math.tanh %321 : vector<2x32xf32>
    %cst_134 = arith.constant 5.000000e-01 : f32
    %323 = vector.broadcast %cst_134 : f32 to vector<2x32xf32>
    %324 = arith.mulf %323, %322 : vector<2x32xf32>
    %cst_135 = arith.constant 5.000000e-01 : f32
    %325 = vector.broadcast %cst_135 : f32 to vector<2x32xf32>
    %326 = arith.addf %324, %325 : vector<2x32xf32>
    %327 = vector.extract_strided_slice %318 {offsets = [0, 32], sizes = [2, 32], strides = [1, 1]} : vector<2x128xf32> to vector<2x32xf32>
    %cst_136 = arith.constant 5.000000e-01 : f32
    %328 = vector.broadcast %cst_136 : f32 to vector<2x32xf32>
    %329 = arith.mulf %328, %327 : vector<2x32xf32>
    %330 = math.tanh %329 : vector<2x32xf32>
    %cst_137 = arith.constant 5.000000e-01 : f32
    %331 = vector.broadcast %cst_137 : f32 to vector<2x32xf32>
    %332 = arith.mulf %331, %330 : vector<2x32xf32>
    %cst_138 = arith.constant 5.000000e-01 : f32
    %333 = vector.broadcast %cst_138 : f32 to vector<2x32xf32>
    %334 = arith.addf %332, %333 : vector<2x32xf32>
    %335 = vector.extract_strided_slice %318 {offsets = [0, 64], sizes = [2, 32], strides = [1, 1]} : vector<2x128xf32> to vector<2x32xf32>
    %336 = math.tanh %335 : vector<2x32xf32>
    %337 = vector.extract_strided_slice %318 {offsets = [0, 96], sizes = [2, 32], strides = [1, 1]} : vector<2x128xf32> to vector<2x32xf32>
    %cst_139 = arith.constant 5.000000e-01 : f32
    %338 = vector.broadcast %cst_139 : f32 to vector<2x32xf32>
    %339 = arith.mulf %338, %337 : vector<2x32xf32>
    %340 = math.tanh %339 : vector<2x32xf32>
    %cst_140 = arith.constant 5.000000e-01 : f32
    %341 = vector.broadcast %cst_140 : f32 to vector<2x32xf32>
    %342 = arith.mulf %341, %340 : vector<2x32xf32>
    %cst_141 = arith.constant 5.000000e-01 : f32
    %343 = vector.broadcast %cst_141 : f32 to vector<2x32xf32>
    %344 = arith.addf %342, %343 : vector<2x32xf32>
    %345 = arith.mulf %334, %315 : vector<2x32xf32>
    %346 = arith.mulf %326, %336 : vector<2x32xf32>
    %347 = arith.addf %345, %346 : vector<2x32xf32>
    %348 = math.tanh %347 : vector<2x32xf32>
    %349 = arith.mulf %344, %348 : vector<2x32xf32>
    %c0_142 = arith.constant 0 : index
    %c0_143 = arith.constant 0 : index
    %350 = vector.load %arg11[%c0_142, %c0_143] : memref<16x32xf32, #tpu.memory_space<vmem>>, vector<2x32xf32>
    tpu.vector_store %arg11[%c0_142, %c0_143], %349 {strides = array<i32>} : memref<16x32xf32, #tpu.memory_space<vmem>>, vector<2x32xf32>,
    %351 = vector.extract_strided_slice %311 {offsets = [2, 0], sizes = [2, 128], strides = [1, 1]} : vector<16x128xf32> to vector<2x128xf32>
    %cst_144 = arith.constant dense<0.000000e+00> : vector<2x128xf32>
    %352 = tpu.matmul %349, %305, %cst_144 {dimension_numbers = #tpu.dot_dimension_numbers<[1], [0], [0], [1], [0, 0, 1, 1], [], []>} : vector<2x32xf32>, vector<32x128xf32>, vector<2x128xf32> -> vector<2x128xf32>
    %353 = arith.addf %351, %352 : vector<2x128xf32>
    %354 = vector.extract_strided_slice %353 {offsets = [0, 0], sizes = [2, 32], strides = [1, 1]} : vector<2x128xf32> to vector<2x32xf32>
    %cst_145 = arith.constant 5.000000e-01 : f32
    %355 = vector.broadcast %cst_145 : f32 to vector<2x32xf32>
    %356 = arith.mulf %355, %354 : vector<2x32xf32>
    %357 = math.tanh %356 : vector<2x32xf32>
    %cst_146 = arith.constant 5.000000e-01 : f32
    %358 = vector.broadcast %cst_146 : f32 to vector<2x32xf32>
    %359 = arith.mulf %358, %357 : vector<2x32xf32>
    %cst_147 = arith.constant 5.000000e-01 : f32
    %360 = vector.broadcast %cst_147 : f32 to vector<2x32xf32>
    %361 = arith.addf %359, %360 : vector<2x32xf32>
    %362 = vector.extract_strided_slice %353 {offsets = [0, 32], sizes = [2, 32], strides = [1, 1]} : vector<2x128xf32> to vector<2x32xf32>
    %cst_148 = arith.constant 5.000000e-01 : f32
    %363 = vector.broadcast %cst_148 : f32 to vector<2x32xf32>
    %364 = arith.mulf %363, %362 : vector<2x32xf32>
    %365 = math.tanh %364 : vector<2x32xf32>
    %cst_149 = arith.constant 5.000000e-01 : f32
    %366 = vector.broadcast %cst_149 : f32 to vector<2x32xf32>
    %367 = arith.mulf %366, %365 : vector<2x32xf32>
    %cst_150 = arith.constant 5.000000e-01 : f32
    %368 = vector.broadcast %cst_150 : f32 to vector<2x32xf32>
    %369 = arith.addf %367, %368 : vector<2x32xf32>
    %370 = vector.extract_strided_slice %353 {offsets = [0, 64], sizes = [2, 32], strides = [1, 1]} : vector<2x128xf32> to vector<2x32xf32>
    %371 = math.tanh %370 : vector<2x32xf32>
    %372 = vector.extract_strided_slice %353 {offsets = [0, 96], sizes = [2, 32], strides = [1, 1]} : vector<2x128xf32> to vector<2x32xf32>
    %cst_151 = arith.constant 5.000000e-01 : f32
    %373 = vector.broadcast %cst_151 : f32 to vector<2x32xf32>
    %374 = arith.mulf %373, %372 : vector<2x32xf32>
    %375 = math.tanh %374 : vector<2x32xf32>
    %cst_152 = arith.constant 5.000000e-01 : f32
    %376 = vector.broadcast %cst_152 : f32 to vector<2x32xf32>
    %377 = arith.mulf %376, %375 : vector<2x32xf32>
    %cst_153 = arith.constant 5.000000e-01 : f32
    %378 = vector.broadcast %cst_153 : f32 to vector<2x32xf32>
    %379 = arith.addf %377, %378 : vector<2x32xf32>
    %380 = arith.mulf %369, %347 : vector<2x32xf32>
    %381 = arith.mulf %361, %371 : vector<2x32xf32>
    %382 = arith.addf %380, %381 : vector<2x32xf32>
    %383 = math.tanh %382 : vector<2x32xf32>
    %384 = arith.mulf %379, %383 : vector<2x32xf32>
    %c2_154 = arith.constant 2 : index
    %c0_155 = arith.constant 0 : index
    %385 = vector.load %arg11[%c2_154, %c0_155] : memref<16x32xf32, #tpu.memory_space<vmem>>, vector<2x32xf32>
    tpu.vector_store %arg11[%c2_154, %c0_155], %384 {strides = array<i32>} : memref<16x32xf32, #tpu.memory_space<vmem>>, vector<2x32xf32>,
    %386 = vector.extract_strided_slice %311 {offsets = [4, 0], sizes = [2, 128], strides = [1, 1]} : vector<16x128xf32> to vector<2x128xf32>
    %cst_156 = arith.constant dense<0.000000e+00> : vector<2x128xf32>
    %387 = tpu.matmul %384, %305, %cst_156 {dimension_numbers = #tpu.dot_dimension_numbers<[1], [0], [0], [1], [0, 0, 1, 1], [], []>} : vector<2x32xf32>, vector<32x128xf32>, vector<2x128xf32> -> vector<2x128xf32>
    %388 = arith.addf %386, %387 : vector<2x128xf32>
    %389 = vector.extract_strided_slice %388 {offsets = [0, 0], sizes = [2, 32], strides = [1, 1]} : vector<2x128xf32> to vector<2x32xf32>
    %cst_157 = arith.constant 5.000000e-01 : f32
    %390 = vector.broadcast %cst_157 : f32 to vector<2x32xf32>
    %391 = arith.mulf %390, %389 : vector<2x32xf32>
    %392 = math.tanh %391 : vector<2x32xf32>
    %cst_158 = arith.constant 5.000000e-01 : f32
    %393 = vector.broadcast %cst_158 : f32 to vector<2x32xf32>
    %394 = arith.mulf %393, %392 : vector<2x32xf32>
    %cst_159 = arith.constant 5.000000e-01 : f32
    %395 = vector.broadcast %cst_159 : f32 to vector<2x32xf32>
    %396 = arith.addf %394, %395 : vector<2x32xf32>
    %397 = vector.extract_strided_slice %388 {offsets = [0, 32], sizes = [2, 32], strides = [1, 1]} : vector<2x128xf32> to vector<2x32xf32>
    %cst_160 = arith.constant 5.000000e-01 : f32
    %398 = vector.broadcast %cst_160 : f32 to vector<2x32xf32>
    %399 = arith.mulf %398, %397 : vector<2x32xf32>
    %400 = math.tanh %399 : vector<2x32xf32>
    %cst_161 = arith.constant 5.000000e-01 : f32
    %401 = vector.broadcast %cst_161 : f32 to vector<2x32xf32>
    %402 = arith.mulf %401, %400 : vector<2x32xf32>
    %cst_162 = arith.constant 5.000000e-01 : f32
    %403 = vector.broadcast %cst_162 : f32 to vector<2x32xf32>
    %404 = arith.addf %402, %403 : vector<2x32xf32>
    %405 = vector.extract_strided_slice %388 {offsets = [0, 64], sizes = [2, 32], strides = [1, 1]} : vector<2x128xf32> to vector<2x32xf32>
    %406 = math.tanh %405 : vector<2x32xf32>
    %407 = vector.extract_strided_slice %388 {offsets = [0, 96], sizes = [2, 32], strides = [1, 1]} : vector<2x128xf32> to vector<2x32xf32>
    %cst_163 = arith.constant 5.000000e-01 : f32
    %408 = vector.broadcast %cst_163 : f32 to vector<2x32xf32>
    %409 = arith.mulf %408, %407 : vector<2x32xf32>
    %410 = math.tanh %409 : vector<2x32xf32>
    %cst_164 = arith.constant 5.000000e-01 : f32
    %411 = vector.broadcast %cst_164 : f32 to vector<2x32xf32>
    %412 = arith.mulf %411, %410 : vector<2x32xf32>
    %cst_165 = arith.constant 5.000000e-01 : f32
    %413 = vector.broadcast %cst_165 : f32 to vector<2x32xf32>
    %414 = arith.addf %412, %413 : vector<2x32xf32>
    %415 = arith.mulf %404, %382 : vector<2x32xf32>
    %416 = arith.mulf %396, %406 : vector<2x32xf32>
    %417 = arith.addf %415, %416 : vector<2x32xf32>
    %418 = math.tanh %417 : vector<2x32xf32>
    %419 = arith.mulf %414, %418 : vector<2x32xf32>
    %c4_166 = arith.constant 4 : index
    %c0_167 = arith.constant 0 : index
    %420 = vector.load %arg11[%c4_166, %c0_167] : memref<16x32xf32, #tpu.memory_space<vmem>>, vector<2x32xf32>
    tpu.vector_store %arg11[%c4_166, %c0_167], %419 {strides = array<i32>} : memref<16x32xf32, #tpu.memory_space<vmem>>, vector<2x32xf32>,
    %421 = vector.extract_strided_slice %311 {offsets = [6, 0], sizes = [2, 128], strides = [1, 1]} : vector<16x128xf32> to vector<2x128xf32>
    %cst_168 = arith.constant dense<0.000000e+00> : vector<2x128xf32>
    %422 = tpu.matmul %419, %305, %cst_168 {dimension_numbers = #tpu.dot_dimension_numbers<[1], [0], [0], [1], [0, 0, 1, 1], [], []>} : vector<2x32xf32>, vector<32x128xf32>, vector<2x128xf32> -> vector<2x128xf32>
    %423 = arith.addf %421, %422 : vector<2x128xf32>
    %424 = vector.extract_strided_slice %423 {offsets = [0, 0], sizes = [2, 32], strides = [1, 1]} : vector<2x128xf32> to vector<2x32xf32>
    %cst_169 = arith.constant 5.000000e-01 : f32
    %425 = vector.broadcast %cst_169 : f32 to vector<2x32xf32>
    %426 = arith.mulf %425, %424 : vector<2x32xf32>
    %427 = math.tanh %426 : vector<2x32xf32>
    %cst_170 = arith.constant 5.000000e-01 : f32
    %428 = vector.broadcast %cst_170 : f32 to vector<2x32xf32>
    %429 = arith.mulf %428, %427 : vector<2x32xf32>
    %cst_171 = arith.constant 5.000000e-01 : f32
    %430 = vector.broadcast %cst_171 : f32 to vector<2x32xf32>
    %431 = arith.addf %429, %430 : vector<2x32xf32>
    %432 = vector.extract_strided_slice %423 {offsets = [0, 32], sizes = [2, 32], strides = [1, 1]} : vector<2x128xf32> to vector<2x32xf32>
    %cst_172 = arith.constant 5.000000e-01 : f32
    %433 = vector.broadcast %cst_172 : f32 to vector<2x32xf32>
    %434 = arith.mulf %433, %432 : vector<2x32xf32>
    %435 = math.tanh %434 : vector<2x32xf32>
    %cst_173 = arith.constant 5.000000e-01 : f32
    %436 = vector.broadcast %cst_173 : f32 to vector<2x32xf32>
    %437 = arith.mulf %436, %435 : vector<2x32xf32>
    %cst_174 = arith.constant 5.000000e-01 : f32
    %438 = vector.broadcast %cst_174 : f32 to vector<2x32xf32>
    %439 = arith.addf %437, %438 : vector<2x32xf32>
    %440 = vector.extract_strided_slice %423 {offsets = [0, 64], sizes = [2, 32], strides = [1, 1]} : vector<2x128xf32> to vector<2x32xf32>
    %441 = math.tanh %440 : vector<2x32xf32>
    %442 = vector.extract_strided_slice %423 {offsets = [0, 96], sizes = [2, 32], strides = [1, 1]} : vector<2x128xf32> to vector<2x32xf32>
    %cst_175 = arith.constant 5.000000e-01 : f32
    %443 = vector.broadcast %cst_175 : f32 to vector<2x32xf32>
    %444 = arith.mulf %443, %442 : vector<2x32xf32>
    %445 = math.tanh %444 : vector<2x32xf32>
    %cst_176 = arith.constant 5.000000e-01 : f32
    %446 = vector.broadcast %cst_176 : f32 to vector<2x32xf32>
    %447 = arith.mulf %446, %445 : vector<2x32xf32>
    %cst_177 = arith.constant 5.000000e-01 : f32
    %448 = vector.broadcast %cst_177 : f32 to vector<2x32xf32>
    %449 = arith.addf %447, %448 : vector<2x32xf32>
    %450 = arith.mulf %439, %417 : vector<2x32xf32>
    %451 = arith.mulf %431, %441 : vector<2x32xf32>
    %452 = arith.addf %450, %451 : vector<2x32xf32>
    %453 = math.tanh %452 : vector<2x32xf32>
    %454 = arith.mulf %449, %453 : vector<2x32xf32>
    %c6_178 = arith.constant 6 : index
    %c0_179 = arith.constant 0 : index
    %455 = vector.load %arg11[%c6_178, %c0_179] : memref<16x32xf32, #tpu.memory_space<vmem>>, vector<2x32xf32>
    tpu.vector_store %arg11[%c6_178, %c0_179], %454 {strides = array<i32>} : memref<16x32xf32, #tpu.memory_space<vmem>>, vector<2x32xf32>,
    %456 = vector.extract_strided_slice %311 {offsets = [8, 0], sizes = [2, 128], strides = [1, 1]} : vector<16x128xf32> to vector<2x128xf32>
    %cst_180 = arith.constant dense<0.000000e+00> : vector<2x128xf32>
    %457 = tpu.matmul %454, %305, %cst_180 {dimension_numbers = #tpu.dot_dimension_numbers<[1], [0], [0], [1], [0, 0, 1, 1], [], []>} : vector<2x32xf32>, vector<32x128xf32>, vector<2x128xf32> -> vector<2x128xf32>
    %458 = arith.addf %456, %457 : vector<2x128xf32>
    %459 = vector.extract_strided_slice %458 {offsets = [0, 0], sizes = [2, 32], strides = [1, 1]} : vector<2x128xf32> to vector<2x32xf32>
    %cst_181 = arith.constant 5.000000e-01 : f32
    %460 = vector.broadcast %cst_181 : f32 to vector<2x32xf32>
    %461 = arith.mulf %460, %459 : vector<2x32xf32>
    %462 = math.tanh %461 : vector<2x32xf32>
    %cst_182 = arith.constant 5.000000e-01 : f32
    %463 = vector.broadcast %cst_182 : f32 to vector<2x32xf32>
    %464 = arith.mulf %463, %462 : vector<2x32xf32>
    %cst_183 = arith.constant 5.000000e-01 : f32
    %465 = vector.broadcast %cst_183 : f32 to vector<2x32xf32>
    %466 = arith.addf %464, %465 : vector<2x32xf32>
    %467 = vector.extract_strided_slice %458 {offsets = [0, 32], sizes = [2, 32], strides = [1, 1]} : vector<2x128xf32> to vector<2x32xf32>
    %cst_184 = arith.constant 5.000000e-01 : f32
    %468 = vector.broadcast %cst_184 : f32 to vector<2x32xf32>
    %469 = arith.mulf %468, %467 : vector<2x32xf32>
    %470 = math.tanh %469 : vector<2x32xf32>
    %cst_185 = arith.constant 5.000000e-01 : f32
    %471 = vector.broadcast %cst_185 : f32 to vector<2x32xf32>
    %472 = arith.mulf %471, %470 : vector<2x32xf32>
    %cst_186 = arith.constant 5.000000e-01 : f32
    %473 = vector.broadcast %cst_186 : f32 to vector<2x32xf32>
    %474 = arith.addf %472, %473 : vector<2x32xf32>
    %475 = vector.extract_strided_slice %458 {offsets = [0, 64], sizes = [2, 32], strides = [1, 1]} : vector<2x128xf32> to vector<2x32xf32>
    %476 = math.tanh %475 : vector<2x32xf32>
    %477 = vector.extract_strided_slice %458 {offsets = [0, 96], sizes = [2, 32], strides = [1, 1]} : vector<2x128xf32> to vector<2x32xf32>
    %cst_187 = arith.constant 5.000000e-01 : f32
    %478 = vector.broadcast %cst_187 : f32 to vector<2x32xf32>
    %479 = arith.mulf %478, %477 : vector<2x32xf32>
    %480 = math.tanh %479 : vector<2x32xf32>
    %cst_188 = arith.constant 5.000000e-01 : f32
    %481 = vector.broadcast %cst_188 : f32 to vector<2x32xf32>
    %482 = arith.mulf %481, %480 : vector<2x32xf32>
    %cst_189 = arith.constant 5.000000e-01 : f32
    %483 = vector.broadcast %cst_189 : f32 to vector<2x32xf32>
    %484 = arith.addf %482, %483 : vector<2x32xf32>
    %485 = arith.mulf %474, %452 : vector<2x32xf32>
    %486 = arith.mulf %466, %476 : vector<2x32xf32>
    %487 = arith.addf %485, %486 : vector<2x32xf32>
    %488 = math.tanh %487 : vector<2x32xf32>
    %489 = arith.mulf %484, %488 : vector<2x32xf32>
    %c8_190 = arith.constant 8 : index
    %c0_191 = arith.constant 0 : index
    %490 = vector.load %arg11[%c8_190, %c0_191] : memref<16x32xf32, #tpu.memory_space<vmem>>, vector<2x32xf32>
    tpu.vector_store %arg11[%c8_190, %c0_191], %489 {strides = array<i32>} : memref<16x32xf32, #tpu.memory_space<vmem>>, vector<2x32xf32>,
    %491 = vector.extract_strided_slice %311 {offsets = [10, 0], sizes = [2, 128], strides = [1, 1]} : vector<16x128xf32> to vector<2x128xf32>
    %cst_192 = arith.constant dense<0.000000e+00> : vector<2x128xf32>
    %492 = tpu.matmul %489, %305, %cst_192 {dimension_numbers = #tpu.dot_dimension_numbers<[1], [0], [0], [1], [0, 0, 1, 1], [], []>} : vector<2x32xf32>, vector<32x128xf32>, vector<2x128xf32> -> vector<2x128xf32>
    %493 = arith.addf %491, %492 : vector<2x128xf32>
    %494 = vector.extract_strided_slice %493 {offsets = [0, 0], sizes = [2, 32], strides = [1, 1]} : vector<2x128xf32> to vector<2x32xf32>
    %cst_193 = arith.constant 5.000000e-01 : f32
    %495 = vector.broadcast %cst_193 : f32 to vector<2x32xf32>
    %496 = arith.mulf %495, %494 : vector<2x32xf32>
    %497 = math.tanh %496 : vector<2x32xf32>
    %cst_194 = arith.constant 5.000000e-01 : f32
    %498 = vector.broadcast %cst_194 : f32 to vector<2x32xf32>
    %499 = arith.mulf %498, %497 : vector<2x32xf32>
    %cst_195 = arith.constant 5.000000e-01 : f32
    %500 = vector.broadcast %cst_195 : f32 to vector<2x32xf32>
    %501 = arith.addf %499, %500 : vector<2x32xf32>
    %502 = vector.extract_strided_slice %493 {offsets = [0, 32], sizes = [2, 32], strides = [1, 1]} : vector<2x128xf32> to vector<2x32xf32>
    %cst_196 = arith.constant 5.000000e-01 : f32
    %503 = vector.broadcast %cst_196 : f32 to vector<2x32xf32>
    %504 = arith.mulf %503, %502 : vector<2x32xf32>
    %505 = math.tanh %504 : vector<2x32xf32>
    %cst_197 = arith.constant 5.000000e-01 : f32
    %506 = vector.broadcast %cst_197 : f32 to vector<2x32xf32>
    %507 = arith.mulf %506, %505 : vector<2x32xf32>
    %cst_198 = arith.constant 5.000000e-01 : f32
    %508 = vector.broadcast %cst_198 : f32 to vector<2x32xf32>
    %509 = arith.addf %507, %508 : vector<2x32xf32>
    %510 = vector.extract_strided_slice %493 {offsets = [0, 64], sizes = [2, 32], strides = [1, 1]} : vector<2x128xf32> to vector<2x32xf32>
    %511 = math.tanh %510 : vector<2x32xf32>
    %512 = vector.extract_strided_slice %493 {offsets = [0, 96], sizes = [2, 32], strides = [1, 1]} : vector<2x128xf32> to vector<2x32xf32>
    %cst_199 = arith.constant 5.000000e-01 : f32
    %513 = vector.broadcast %cst_199 : f32 to vector<2x32xf32>
    %514 = arith.mulf %513, %512 : vector<2x32xf32>
    %515 = math.tanh %514 : vector<2x32xf32>
    %cst_200 = arith.constant 5.000000e-01 : f32
    %516 = vector.broadcast %cst_200 : f32 to vector<2x32xf32>
    %517 = arith.mulf %516, %515 : vector<2x32xf32>
    %cst_201 = arith.constant 5.000000e-01 : f32
    %518 = vector.broadcast %cst_201 : f32 to vector<2x32xf32>
    %519 = arith.addf %517, %518 : vector<2x32xf32>
    %520 = arith.mulf %509, %487 : vector<2x32xf32>
    %521 = arith.mulf %501, %511 : vector<2x32xf32>
    %522 = arith.addf %520, %521 : vector<2x32xf32>
    %523 = math.tanh %522 : vector<2x32xf32>
    %524 = arith.mulf %519, %523 : vector<2x32xf32>
    %c10_202 = arith.constant 10 : index
    %c0_203 = arith.constant 0 : index
    %525 = vector.load %arg11[%c10_202, %c0_203] : memref<16x32xf32, #tpu.memory_space<vmem>>, vector<2x32xf32>
    tpu.vector_store %arg11[%c10_202, %c0_203], %524 {strides = array<i32>} : memref<16x32xf32, #tpu.memory_space<vmem>>, vector<2x32xf32>,
    %526 = vector.extract_strided_slice %311 {offsets = [12, 0], sizes = [2, 128], strides = [1, 1]} : vector<16x128xf32> to vector<2x128xf32>
    %cst_204 = arith.constant dense<0.000000e+00> : vector<2x128xf32>
    %527 = tpu.matmul %524, %305, %cst_204 {dimension_numbers = #tpu.dot_dimension_numbers<[1], [0], [0], [1], [0, 0, 1, 1], [], []>} : vector<2x32xf32>, vector<32x128xf32>, vector<2x128xf32> -> vector<2x128xf32>
    %528 = arith.addf %526, %527 : vector<2x128xf32>
    %529 = vector.extract_strided_slice %528 {offsets = [0, 0], sizes = [2, 32], strides = [1, 1]} : vector<2x128xf32> to vector<2x32xf32>
    %cst_205 = arith.constant 5.000000e-01 : f32
    %530 = vector.broadcast %cst_205 : f32 to vector<2x32xf32>
    %531 = arith.mulf %530, %529 : vector<2x32xf32>
    %532 = math.tanh %531 : vector<2x32xf32>
    %cst_206 = arith.constant 5.000000e-01 : f32
    %533 = vector.broadcast %cst_206 : f32 to vector<2x32xf32>
    %534 = arith.mulf %533, %532 : vector<2x32xf32>
    %cst_207 = arith.constant 5.000000e-01 : f32
    %535 = vector.broadcast %cst_207 : f32 to vector<2x32xf32>
    %536 = arith.addf %534, %535 : vector<2x32xf32>
    %537 = vector.extract_strided_slice %528 {offsets = [0, 32], sizes = [2, 32], strides = [1, 1]} : vector<2x128xf32> to vector<2x32xf32>
    %cst_208 = arith.constant 5.000000e-01 : f32
    %538 = vector.broadcast %cst_208 : f32 to vector<2x32xf32>
    %539 = arith.mulf %538, %537 : vector<2x32xf32>
    %540 = math.tanh %539 : vector<2x32xf32>
    %cst_209 = arith.constant 5.000000e-01 : f32
    %541 = vector.broadcast %cst_209 : f32 to vector<2x32xf32>
    %542 = arith.mulf %541, %540 : vector<2x32xf32>
    %cst_210 = arith.constant 5.000000e-01 : f32
    %543 = vector.broadcast %cst_210 : f32 to vector<2x32xf32>
    %544 = arith.addf %542, %543 : vector<2x32xf32>
    %545 = vector.extract_strided_slice %528 {offsets = [0, 64], sizes = [2, 32], strides = [1, 1]} : vector<2x128xf32> to vector<2x32xf32>
    %546 = math.tanh %545 : vector<2x32xf32>
    %547 = vector.extract_strided_slice %528 {offsets = [0, 96], sizes = [2, 32], strides = [1, 1]} : vector<2x128xf32> to vector<2x32xf32>
    %cst_211 = arith.constant 5.000000e-01 : f32
    %548 = vector.broadcast %cst_211 : f32 to vector<2x32xf32>
    %549 = arith.mulf %548, %547 : vector<2x32xf32>
    %550 = math.tanh %549 : vector<2x32xf32>
    %cst_212 = arith.constant 5.000000e-01 : f32
    %551 = vector.broadcast %cst_212 : f32 to vector<2x32xf32>
    %552 = arith.mulf %551, %550 : vector<2x32xf32>
    %cst_213 = arith.constant 5.000000e-01 : f32
    %553 = vector.broadcast %cst_213 : f32 to vector<2x32xf32>
    %554 = arith.addf %552, %553 : vector<2x32xf32>
    %555 = arith.mulf %544, %522 : vector<2x32xf32>
    %556 = arith.mulf %536, %546 : vector<2x32xf32>
    %557 = arith.addf %555, %556 : vector<2x32xf32>
    %558 = math.tanh %557 : vector<2x32xf32>
    %559 = arith.mulf %554, %558 : vector<2x32xf32>
    %c12_214 = arith.constant 12 : index
    %c0_215 = arith.constant 0 : index
    %560 = vector.load %arg11[%c12_214, %c0_215] : memref<16x32xf32, #tpu.memory_space<vmem>>, vector<2x32xf32>
    tpu.vector_store %arg11[%c12_214, %c0_215], %559 {strides = array<i32>} : memref<16x32xf32, #tpu.memory_space<vmem>>, vector<2x32xf32>,
    %561 = vector.extract_strided_slice %311 {offsets = [14, 0], sizes = [2, 128], strides = [1, 1]} : vector<16x128xf32> to vector<2x128xf32>
    %cst_216 = arith.constant dense<0.000000e+00> : vector<2x128xf32>
    %562 = tpu.matmul %559, %305, %cst_216 {dimension_numbers = #tpu.dot_dimension_numbers<[1], [0], [0], [1], [0, 0, 1, 1], [], []>} : vector<2x32xf32>, vector<32x128xf32>, vector<2x128xf32> -> vector<2x128xf32>
    %563 = arith.addf %561, %562 : vector<2x128xf32>
    %564 = vector.extract_strided_slice %563 {offsets = [0, 0], sizes = [2, 32], strides = [1, 1]} : vector<2x128xf32> to vector<2x32xf32>
    %cst_217 = arith.constant 5.000000e-01 : f32
    %565 = vector.broadcast %cst_217 : f32 to vector<2x32xf32>
    %566 = arith.mulf %565, %564 : vector<2x32xf32>
    %567 = math.tanh %566 : vector<2x32xf32>
    %cst_218 = arith.constant 5.000000e-01 : f32
    %568 = vector.broadcast %cst_218 : f32 to vector<2x32xf32>
    %569 = arith.mulf %568, %567 : vector<2x32xf32>
    %cst_219 = arith.constant 5.000000e-01 : f32
    %570 = vector.broadcast %cst_219 : f32 to vector<2x32xf32>
    %571 = arith.addf %569, %570 : vector<2x32xf32>
    %572 = vector.extract_strided_slice %563 {offsets = [0, 32], sizes = [2, 32], strides = [1, 1]} : vector<2x128xf32> to vector<2x32xf32>
    %cst_220 = arith.constant 5.000000e-01 : f32
    %573 = vector.broadcast %cst_220 : f32 to vector<2x32xf32>
    %574 = arith.mulf %573, %572 : vector<2x32xf32>
    %575 = math.tanh %574 : vector<2x32xf32>
    %cst_221 = arith.constant 5.000000e-01 : f32
    %576 = vector.broadcast %cst_221 : f32 to vector<2x32xf32>
    %577 = arith.mulf %576, %575 : vector<2x32xf32>
    %cst_222 = arith.constant 5.000000e-01 : f32
    %578 = vector.broadcast %cst_222 : f32 to vector<2x32xf32>
    %579 = arith.addf %577, %578 : vector<2x32xf32>
    %580 = vector.extract_strided_slice %563 {offsets = [0, 64], sizes = [2, 32], strides = [1, 1]} : vector<2x128xf32> to vector<2x32xf32>
    %581 = math.tanh %580 : vector<2x32xf32>
    %582 = vector.extract_strided_slice %563 {offsets = [0, 96], sizes = [2, 32], strides = [1, 1]} : vector<2x128xf32> to vector<2x32xf32>
    %cst_223 = arith.constant 5.000000e-01 : f32
    %583 = vector.broadcast %cst_223 : f32 to vector<2x32xf32>
    %584 = arith.mulf %583, %582 : vector<2x32xf32>
    %585 = math.tanh %584 : vector<2x32xf32>
    %cst_224 = arith.constant 5.000000e-01 : f32
    %586 = vector.broadcast %cst_224 : f32 to vector<2x32xf32>
    %587 = arith.mulf %586, %585 : vector<2x32xf32>
    %cst_225 = arith.constant 5.000000e-01 : f32
    %588 = vector.broadcast %cst_225 : f32 to vector<2x32xf32>
    %589 = arith.addf %587, %588 : vector<2x32xf32>
    %590 = arith.mulf %579, %557 : vector<2x32xf32>
    %591 = arith.mulf %571, %581 : vector<2x32xf32>
    %592 = arith.addf %590, %591 : vector<2x32xf32>
    %593 = math.tanh %592 : vector<2x32xf32>
    %594 = arith.mulf %589, %593 : vector<2x32xf32>
    %c14_226 = arith.constant 14 : index
    %c0_227 = arith.constant 0 : index
    %595 = vector.load %arg11[%c14_226, %c0_227] : memref<16x32xf32, #tpu.memory_space<vmem>>, vector<2x32xf32>
    tpu.vector_store %arg11[%c14_226, %c0_227], %594 {strides = array<i32>} : memref<16x32xf32, #tpu.memory_space<vmem>>, vector<2x32xf32>,
    %c1_228 = arith.constant 1 : index
    %c0_229 = arith.constant 0 : index
    %c0_230 = arith.constant 0 : index
    %596 = vector.load %arg9[%c1_228, %c0_229, %c0_230] : memref<2x2x32xf32, #tpu.memory_space<vmem>>, vector<1x2x32xf32>
    %597 = vector.shape_cast %596 : vector<1x2x32xf32> to vector<2x32xf32>
    %598 = vector.shape_cast %594 : vector<2x32xf32> to vector<1x2x32xf32>
    tpu.vector_store %arg9[%c1_228, %c0_229, %c0_230], %598 {strides = array<i32>} : memref<2x2x32xf32, #tpu.memory_space<vmem>>, vector<1x2x32xf32>,
    %c1_231 = arith.constant 1 : index
    %c0_232 = arith.constant 0 : index
    %c0_233 = arith.constant 0 : index
    %599 = vector.load %arg10[%c1_231, %c0_232, %c0_233] : memref<2x2x32xf32, #tpu.memory_space<vmem>>, vector<1x2x32xf32>
    %600 = vector.shape_cast %599 : vector<1x2x32xf32> to vector<2x32xf32>
    %601 = vector.shape_cast %592 : vector<2x32xf32> to vector<1x2x32xf32>
    tpu.vector_store %arg10[%c1_231, %c0_232, %c0_233], %601 {strides = array<i32>} : memref<2x2x32xf32, #tpu.memory_space<vmem>>, vector<1x2x32xf32>,
    %c0_234 = arith.constant 0 : index
    %c0_235 = arith.constant 0 : index
    %602 = vector.load %arg11[%c0_234, %c0_235] : memref<16x32xf32, #tpu.memory_space<vmem>>, vector<16x32xf32>
    %c0_236 = arith.constant 0 : index
    %c0_237 = arith.constant 0 : index
    %603 = vector.load %arg6[%c0_236, %c0_237] : memref<32x128xf32, #tpu.memory_space<vmem>>, vector<32x128xf32>
    %cst_238 = arith.constant dense<0.000000e+00> : vector<16x128xf32>
    %604 = tpu.matmul %602, %603, %cst_238 {dimension_numbers = #tpu.dot_dimension_numbers<[1], [0], [0], [1], [0, 0, 1, 1], [], []>} : vector<16x32xf32>, vector<32x128xf32>, vector<16x128xf32> -> vector<16x128xf32>
    %c0_239 = arith.constant 0 : index
    %c0_240 = arith.constant 0 : index
    %605 = vector.load %arg7[%c0_239, %c0_240] : memref<1x128xf32, #tpu.memory_space<vmem>>, vector<1x128xf32>
    %606 = vector.broadcast %605 : vector<1x128xf32> to vector<16x128xf32>
    %607 = arith.addf %604, %606 : vector<16x128xf32>
    %c0_241 = arith.constant 0 : index
    %c0_242 = arith.constant 0 : index
    %608 = vector.load %arg8[%c0_241, %c0_242] : memref<16x128xf32, #tpu.memory_space<vmem>>, vector<16x128xf32>
    tpu.vector_store %arg8[%c0_241, %c0_242], %607 {strides = array<i32>} : memref<16x128xf32, #tpu.memory_space<vmem>>, vector<16x128xf32>,
    return
  }
}

</mosaic_0001>

<llo_original>
// kernel: rnn_model_forward.1
$region0: #{rnn_model_forward.1}
  #allocation0 [shape = 'u32[]', space=smem, size = 0x4, offset = 0x4, fixed_abs, tag = 'smem constant byte address 0x4 - core index']
  #allocation1 [shape = 'u32[72,128]{1,0:T(1,128)}', space=vmem, size = 0x9000, scoped, tag = 'internal scratch']
  #allocation2 [shape = 'f32[16,32]{1,0:T(8,128)}', space=vmem, size = 0x2000, scoped, tag = 'scratch operand']
  %s0 = inlined_call_operand.vmem [shape: f32[16,32], index: 0, kind: input, shape index: {}]
  %s1 = inlined_call_operand.vmem [shape: f32[2,2,32], index: 1, kind: input, shape index: {}]
  %s2 = inlined_call_operand.vmem [shape: f32[2,2,32], index: 2, kind: input, shape index: {}]
  %s3 = inlined_call_operand.vmem [shape: f32[2,32,128], index: 3, kind: input, shape index: {}]
  %s4 = inlined_call_operand.vmem [shape: f32[2,32,128], index: 4, kind: input, shape index: {}]
  %s5 = inlined_call_operand.vmem [shape: f32[2,1,128], index: 5, kind: input, shape index: {}]
  %s6 = inlined_call_operand.vmem [shape: f32[32,128], index: 6, kind: input, shape index: {}]
  %s7 = inlined_call_operand.vmem [shape: f32[1,128], index: 7, kind: input, shape index: {}]
  %s8 = inlined_call_operand.hbm [shape: f32[16,128], index: 8, kind: output, shape index: {0}]
  %s9 = inlined_call_operand.hbm [shape: f32[2,2,32], index: 9, kind: output, shape index: {1}]
  %s10 = inlined_call_operand.hbm [shape: f32[2,2,32], index: 10, kind: output, shape index: {2}]
  %11 = xla_tuple %s8, %s9, %s10
  %s12 = sld [smem:[#allocation0]]
  $region58: #{rnn_model_forward.1} parent=0
    _
  %s14 = ssub.s32 1, %s12
  %s15 = scalar_select 0, %s14, %s12
  $region1: #{rnn_model_forward.1} parent=0
    #allocation3 [shape = 'u8[8192]{0}', space=vmem, size = 0x2000, scoped, tag = 'output window, operand 0, single buffered']
    #allocation4 [shape = 's32[1]{0}', space=sflag, size = 0x4, scoped, tag = 'scoped memory for rnn_model_forward.1']
    #allocation5 [shape = 'u8[2048]{0}', space=vmem, size = 0x800, scoped, tag = 'output window, operand 1, single buffered']
    #allocation6 [shape = 's32[1]{0}', space=sflag, size = 0x4, scoped, tag = 'scoped memory for rnn_model_forward.1']
    #allocation7 [shape = 'u8[2048]{0}', space=vmem, size = 0x800, scoped, tag = 'output window, operand 2, single buffered']
    %16 = vsyncpa [#allocation4], 0
    %17 = vsyncpa [#allocation6], 0
    // Predicated region
    $region2: #{rnn_model_forward.1} parent=1 // pred_check
      _
    $region3: #{rnn_model_forward.1} parent=1 // pred_check_branch
      %19 = sbr.rel (0) target = $region5
    $region4: #{rnn_model_forward.1} parent=1 // pred_region
      _
    $region5: #{rnn_model_forward.1} parent=1 // pred_fallthru
      _
    // Predicated region
    $region6: #{rnn_model_forward.1} parent=1 // pred_check
      _
    $region7: #{rnn_model_forward.1} parent=1 // pred_check_branch
      %21 = sbr.rel (0) target = $region9
    $region8: #{rnn_model_forward.1} parent=1 // pred_region
      _
    $region9: #{rnn_model_forward.1} parent=1 // pred_fallthru
      _
    // Predicated region
    $region10: #{rnn_model_forward.1} parent=1 // pred_check
      _
    $region11: #{rnn_model_forward.1} parent=1 // pred_check_branch
      %23 = sbr.rel (0) target = $region13
    $region12: #{rnn_model_forward.1} parent=1 // pred_region
      _
    $region13: #{rnn_model_forward.1} parent=1 // pred_fallthru
      _
    // Predicated region
    $region14: #{rnn_model_forward.1} parent=1 // pred_check
      _
    $region15: #{rnn_model_forward.1} parent=1 // pred_check_branch
      %25 = sbr.rel (0) target = $region17
    $region16: #{rnn_model_forward.1} parent=1 // pred_region
      _
    $region17: #{rnn_model_forward.1} parent=1 // pred_fallthru
      _
    // Predicated region
    $region18: #{rnn_model_forward.1} parent=1 // pred_check
      _
    $region19: #{rnn_model_forward.1} parent=1 // pred_check_branch
      %27 = sbr.rel (0) target = $region21
    $region20: #{rnn_model_forward.1} parent=1 // pred_region
      _
    $region21: #{rnn_model_forward.1} parent=1 // pred_fallthru
      _
    // Predicated region
    $region22: #{rnn_model_forward.1} parent=1 // pred_check
      _
    $region23: #{rnn_model_forward.1} parent=1 // pred_check_branch
      %29 = sbr.rel (0) target = $region25
    $region24: #{rnn_model_forward.1} parent=1 // pred_region
      _
    $region25: #{rnn_model_forward.1} parent=1 // pred_fallthru
      _
    // Predicated region
    $region26: #{rnn_model_forward.1} parent=1 // pred_check
      _
    $region27: #{rnn_model_forward.1} parent=1 // pred_check_branch
      %31 = sbr.rel (0) target = $region29
    $region28: #{rnn_model_forward.1} parent=1 // pred_region
      _
    $region29: #{rnn_model_forward.1} parent=1 // pred_fallthru
      _
    // Predicated region
    $region30: #{rnn_model_forward.1} parent=1 // pred_check
      _
    $region31: #{rnn_model_forward.1} parent=1 // pred_check_branch
      %33 = sbr.rel (0) target = $region33
    $region32: #{rnn_model_forward.1} parent=1 // pred_region
      _
    $region33: #{rnn_model_forward.1} parent=1 // pred_fallthru
      _
    %v34 = vld [vmem:[%s0] sm:$0xff]
    %v35 = vld [vmem:[%s0 + $0x8] sm:$0xff]
    %vm36 = vcmask 261120
    %37 = vst.msk [vmem:[#allocation2] sm:$0xff] %vm36, %v34
    %38 = vst.msk [vmem:[#allocation2 + $0x8] sm:$0xff] %vm36, %v35
    %v39 = vld [vmem:[%s3] sm:$0xff]
    %v40 = vld [vmem:[%s3 + $0x8] sm:$0xff]
    %v41 = vld [vmem:[%s3 + $0x10] sm:$0xff]
    %v42 = vld [vmem:[%s3 + $0x18] sm:$0xff]
    %v43 = vld [vmem:[%s4] sm:$0xff]
    %v44 = vld [vmem:[%s4 + $0x8] sm:$0xff]
    %v45 = vld [vmem:[%s4 + $0x10] sm:$0xff]
    %v46 = vld [vmem:[%s4 + $0x18] sm:$0xff]
    %v47 = vld [vmem:[%s5] sm:$0x1]
    %v48 = vld [vmem:[#allocation2] sm:$0xff]
    %v49 = vld [vmem:[#allocation2 + $0x8] sm:$0xff]
    %v51 = vperm.slane %v47, 0
    %v54 = vsel %vm36, %v48, 0
    %v57 = vsel %vm36, %v49, 0
    %59 = vmatpush.msra.mxu0 0.0
    %60 = vmatpush.msra.mxu0 0.0
    %61 = vmatpush.msra.mxu0 0.0
    %62 = vmatpush.msra.mxu0 0.0
    %63 = vmatpush.msra.mxu0 0.0
    %64 = vmatpush.msra.mxu0 0.0
    %65 = vmatpush.msra.mxu0 0.0
    %66 = vmatpush.msra.mxu0 0.0
    %67 = vmatpush.msra.mxu0 0.0
    %68 = vmatpush.msra.mxu0 0.0
    %69 = vmatpush.msra.mxu0 0.0
    %70 = vmatpush.msra.mxu0 0.0
    %71 = vmatpush.msra.mxu0 %v42
    %72 = vmatpush.msra.mxu0 %v41
    %73 = vmatpush.msra.mxu0 %v40
    %74 = vmatpush.msra.mxu0 %v39
    %75 = vmatmul.f32.gmra.mxu0 %v54
    %v76 = vpop.f32.mrf.mxu0
    %v77 = vadd.f32 %v51, %v76
    %78 = vmatmul.f32.gmra.mxu0 %v57
    %v79 = vpop.f32.mrf.mxu0
    %v80 = vadd.f32 %v51, %v79
    %81 = vdwg.mxu0
    %v82 = vld [vmem:[%s1] sm:$0x3]
    %v83 = vld [vmem:[%s2] sm:$0x3]
    %v85 = vsel %vm36, %v82, 0
    %87 = vmatpush.msra.mxu0 0.0
    %88 = vmatpush.msra.mxu0 0.0
    %89 = vmatpush.msra.mxu0 0.0
    %90 = vmatpush.msra.mxu0 0.0
    %91 = vmatpush.msra.mxu0 0.0
    %92 = vmatpush.msra.mxu0 0.0
    %93 = vmatpush.msra.mxu0 0.0
    %94 = vmatpush.msra.mxu0 0.0
    %95 = vmatpush.msra.mxu0 0.0
    %96 = vmatpush.msra.mxu0 0.0
    %97 = vmatpush.msra.mxu0 0.0
    %98 = vmatpush.msra.mxu0 0.0
    %99 = vmatpush.msra.mxu0 %v46
    %100 = vmatpush.msra.mxu0 %v45
    %101 = vmatpush.msra.mxu0 %v44
    %102 = vmatpush.msra.mxu0 %v43
    %103 = vmatmul.f32.gmra.mxu0 %v85
    %v104 = vpop.f32.mrf.mxu0
    %v105 = vadd.f32 0.0, %v104
    %106 = vdwg.mxu0
    %v107 = vadd.f32 %v77, %v105
    %v108 = vmul.f32 %v107, 0.5
    %v109 = vtanh.pop %v108
    %v110 = vmul.f32 %v109, 0.5
    %v111 = vadd.f32 %v110, 0.5
    %v112 = vtanh.pop %v107
    %114 = vrot.lane.b32.xlu0 %v83, 32
    %v115 = vpop.permute.xlu0 %114
    %v117 = vmul.f32 %v111, %v115
    %119 = vrot.lane.b32.xlu0 %v112, 64
    %v120 = vpop.permute.xlu0 %119
    %v122 = vmul.f32 %v111, %v120
    %124 = vrot.lane.b32.xlu0 %v122, 32
    %v125 = vpop.permute.xlu0 %124
    %v127 = vadd.f32 %v117, %v125
    %v128 = vtanh.pop %v127
    %130 = vrot.lane.b32.xlu0 %v128, 64
    %v131 = vpop.permute.xlu0 %130
    %v133 = vmul.f32 %v111, %v131
    %135 = vrot.lane.b32.xlu0 %v133, 32
    %v136 = vpop.permute.xlu0 %135
    %vm138 = vcmask 254976
    %139 = vst.msk [vmem:[#allocation2] sm:$0x3] %vm138, %v136
    %v140 = vsel %vm36, %v136, 0
    %142 = vmatpush.msra.mxu0 0.0
    %143 = vmatpush.msra.mxu0 0.0
    %144 = vmatpush.msra.mxu0 0.0
    %145 = vmatpush.msra.mxu0 0.0
    %146 = vmatpush.msra.mxu0 0.0
    %147 = vmatpush.msra.mxu0 0.0
    %148 = vmatpush.msra.mxu0 0.0
    %149 = vmatpush.msra.mxu0 0.0
    %150 = vmatpush.msra.mxu0 0.0
    %151 = vmatpush.msra.mxu0 0.0
    %152 = vmatpush.msra.mxu0 0.0
    %153 = vmatpush.msra.mxu0 0.0
    %154 = vmatpush.msra.mxu0 %v46
    %155 = vmatpush.msra.mxu0 %v45
    %156 = vmatpush.msra.mxu0 %v44
    %157 = vmatpush.msra.mxu0 %v43
    %158 = vmatmul.f32.gmra.mxu0 %v140
    %v159 = vpop.f32.mrf.mxu0
    %v160 = vadd.f32 0.0, %v159
    %161 = vdwg.mxu0
    %v163 = vrot.slane %v160, 6
    %v165 = vadd.f32 %v77, %v163
    %v166 = vmul.f32 %v165, 0.5
    %v167 = vtanh.pop %v166
    %v168 = vmul.f32 %v167, 0.5
    %v169 = vadd.f32 %v168, 0.5
    %v170 = vtanh.pop %v165
    %v172 = vrot.slane %v127, 6
    %v174 = vmul.f32 %v169, %v172
    %176 = vrot.lane.b32.xlu0 %v170, 64
    %v177 = vpop.permute.xlu0 %176
    %v179 = vmul.f32 %v169, %v177
    %181 = vrot.lane.b32.xlu0 %v179, 32
    %v182 = vpop.permute.xlu0 %181
    %v184 = vadd.f32 %v174, %v182
    %v185 = vtanh.pop %v184
    %187 = vrot.lane.b32.xlu0 %v185, 64
    %v188 = vpop.permute.xlu0 %187
    %v190 = vmul.f32 %v169, %v188
    %192 = vrot.lane.b32.xlu0 %v190, 32
    %v193 = vpop.permute.xlu0 %192
    %vm195 = vcmask 257026
    %196 = vst.msk [vmem:[#allocation2] sm:$0xc] %vm195, %v193
    %v197 = vrot.slane %v190, 2
    %198 = vrot.lane.b32.xlu0 %v197, 32
    %v199 = vpop.permute.xlu0 %198
    %v200 = vsel %vm36, %v199, 0
    %202 = vmatpush.msra.mxu0 0.0
    %203 = vmatpush.msra.mxu0 0.0
    %204 = vmatpush.msra.mxu0 0.0
    %205 = vmatpush.msra.mxu0 0.0
    %206 = vmatpush.msra.mxu0 0.0
    %207 = vmatpush.msra.mxu0 0.0
    %208 = vmatpush.msra.mxu0 0.0
    %209 = vmatpush.msra.mxu0 0.0
    %210 = vmatpush.msra.mxu0 0.0
    %211 = vmatpush.msra.mxu0 0.0
    %212 = vmatpush.msra.mxu0 0.0
    %213 = vmatpush.msra.mxu0 0.0
    %214 = vmatpush.msra.mxu0 %v46
    %215 = vmatpush.msra.mxu0 %v45
    %216 = vmatpush.msra.mxu0 %v44
    %217 = vmatpush.msra.mxu0 %v43
    %218 = vmatmul.f32.gmra.mxu0 %v200
    %v219 = vpop.f32.mrf.mxu0
    %v220 = vadd.f32 0.0, %v219
    %221 = vdwg.mxu0
    %v223 = vrot.slane %v220, 4
    %v225 = vadd.f32 %v77, %v223
    %v226 = vmul.f32 %v225, 0.5
    %v227 = vtanh.pop %v226
    %v228 = vmul.f32 %v227, 0.5
    %v229 = vadd.f32 %v228, 0.5
    %v230 = vtanh.pop %v225
    %v232 = vrot.slane %v184, 6
    %v234 = vmul.f32 %v229, %v232
    %236 = vrot.lane.b32.xlu0 %v230, 64
    %v237 = vpop.permute.xlu0 %236
    %v239 = vmul.f32 %v229, %v237
    %241 = vrot.lane.b32.xlu0 %v239, 32
    %v242 = vpop.permute.xlu0 %241
    %v244 = vadd.f32 %v234, %v242
    %v245 = vtanh.pop %v244
    %247 = vrot.lane.b32.xlu0 %v245, 64
    %v248 = vpop.permute.xlu0 %247
    %v250 = vmul.f32 %v229, %v248
    %252 = vrot.lane.b32.xlu0 %v250, 32
    %v253 = vpop.permute.xlu0 %252
    %vm255 = vcmask 259076
    %256 = vst.msk [vmem:[#allocation2] sm:$0x30] %vm255, %v253
    %v257 = vrot.slane %v250, 4
    %258 = vrot.lane.b32.xlu0 %v257, 32
    %v259 = vpop.permute.xlu0 %258
    %v260 = vsel %vm36, %v259, 0
    %262 = vmatpush.msra.mxu0 0.0
    %263 = vmatpush.msra.mxu0 0.0
    %264 = vmatpush.msra.mxu0 0.0
    %265 = vmatpush.msra.mxu0 0.0
    %266 = vmatpush.msra.mxu0 0.0
    %267 = vmatpush.msra.mxu0 0.0
    %268 = vmatpush.msra.mxu0 0.0
    %269 = vmatpush.msra.mxu0 0.0
    %270 = vmatpush.msra.mxu0 0.0
    %271 = vmatpush.msra.mxu0 0.0
    %272 = vmatpush.msra.mxu0 0.0
    %273 = vmatpush.msra.mxu0 0.0
    %274 = vmatpush.msra.mxu0 %v46
    %275 = vmatpush.msra.mxu0 %v45
    %276 = vmatpush.msra.mxu0 %v44
    %277 = vmatpush.msra.mxu0 %v43
    %278 = vmatmul.f32.gmra.mxu0 %v260
    %v279 = vpop.f32.mrf.mxu0
    %v280 = vadd.f32 0.0, %v279
    %281 = vdwg.mxu0
    %v283 = vrot.slane %v280, 2
    %v285 = vadd.f32 %v77, %v283
    %v286 = vmul.f32 %v285, 0.5
    %v287 = vtanh.pop %v286
    %v288 = vmul.f32 %v287, 0.5
    %v289 = vadd.f32 %v288, 0.5
    %v290 = vtanh.pop %v285
    %v292 = vrot.slane %v244, 6
    %v294 = vmul.f32 %v289, %v292
    %296 = vrot.lane.b32.xlu0 %v290, 64
    %v297 = vpop.permute.xlu0 %296
    %v299 = vmul.f32 %v289, %v297
    %301 = vrot.lane.b32.xlu0 %v299, 32
    %v302 = vpop.permute.xlu0 %301
    %v304 = vadd.f32 %v294, %v302
    %v305 = vtanh.pop %v304
    %307 = vrot.lane.b32.xlu0 %v305, 64
    %v308 = vpop.permute.xlu0 %307
    %v310 = vmul.f32 %v289, %v308
    %312 = vrot.lane.b32.xlu0 %v310, 32
    %v313 = vpop.permute.xlu0 %312
    %vm315 = vcmask 261126
    %316 = vst.msk [vmem:[#allocation2] sm:$0xc0] %vm315, %v313
    %v317 = vrot.slane %v310, 6
    %318 = vrot.lane.b32.xlu0 %v317, 32
    %v319 = vpop.permute.xlu0 %318
    %v320 = vsel %vm36, %v319, 0
    %322 = vmatpush.msra.mxu0 0.0
    %323 = vmatpush.msra.mxu0 0.0
    %324 = vmatpush.msra.mxu0 0.0
    %325 = vmatpush.msra.mxu0 0.0
    %326 = vmatpush.msra.mxu0 0.0
    %327 = vmatpush.msra.mxu0 0.0
    %328 = vmatpush.msra.mxu0 0.0
    %329 = vmatpush.msra.mxu0 0.0
    %330 = vmatpush.msra.mxu0 0.0
    %331 = vmatpush.msra.mxu0 0.0
    %332 = vmatpush.msra.mxu0 0.0
    %333 = vmatpush.msra.mxu0 0.0
    %334 = vmatpush.msra.mxu0 %v46
    %335 = vmatpush.msra.mxu0 %v45
    %336 = vmatpush.msra.mxu0 %v44
    %337 = vmatpush.msra.mxu0 %v43
    %338 = vmatmul.f32.gmra.mxu0 %v320
    %v339 = vpop.f32.mrf.mxu0
    %v340 = vadd.f32 0.0, %v339
    %341 = vdwg.mxu0
    %v342 = vadd.f32 %v80, %v340
    %v343 = vmul.f32 %v342, 0.5
    %v344 = vtanh.pop %v343
    %v345 = vmul.f32 %v344, 0.5
    %v346 = vadd.f32 %v345, 0.5
    %v347 = vtanh.pop %v342
    %v349 = vrot.slane %v304, 6
    %v351 = vmul.f32 %v346, %v349
    %353 = vrot.lane.b32.xlu0 %v347, 64
    %v354 = vpop.permute.xlu0 %353
    %v356 = vmul.f32 %v346, %v354
    %358 = vrot.lane.b32.xlu0 %v356, 32
    %v359 = vpop.permute.xlu0 %358
    %v361 = vadd.f32 %v351, %v359
    %v362 = vtanh.pop %v361
    %364 = vrot.lane.b32.xlu0 %v362, 64
    %v365 = vpop.permute.xlu0 %364
    %v367 = vmul.f32 %v346, %v365
    %369 = vrot.lane.b32.xlu0 %v367, 32
    %v370 = vpop.permute.xlu0 %369
    %372 = vst.msk [vmem:[#allocation2 + $0x8] sm:$0x3] %vm138, %v370
    %v373 = vsel %vm36, %v370, 0
    %375 = vmatpush.msra.mxu0 0.0
    %376 = vmatpush.msra.mxu0 0.0
    %377 = vmatpush.msra.mxu0 0.0
    %378 = vmatpush.msra.mxu0 0.0
    %379 = vmatpush.msra.mxu0 0.0
    %380 = vmatpush.msra.mxu0 0.0
    %381 = vmatpush.msra.mxu0 0.0
    %382 = vmatpush.msra.mxu0 0.0
    %383 = vmatpush.msra.mxu0 0.0
    %384 = vmatpush.msra.mxu0 0.0
    %385 = vmatpush.msra.mxu0 0.0
    %386 = vmatpush.msra.mxu0 0.0
    %387 = vmatpush.msra.mxu0 %v46
    %388 = vmatpush.msra.mxu0 %v45
    %389 = vmatpush.msra.mxu0 %v44
    %390 = vmatpush.msra.mxu0 %v43
    %391 = vmatmul.f32.gmra.mxu0 %v373
    %v392 = vpop.f32.mrf.mxu0
    %v393 = vadd.f32 0.0, %v392
    %394 = vdwg.mxu0
    %v396 = vrot.slane %v393, 6
    %v398 = vadd.f32 %v80, %v396
    %v399 = vmul.f32 %v398, 0.5
    %v400 = vtanh.pop %v399
    %v401 = vmul.f32 %v400, 0.5
    %v402 = vadd.f32 %v401, 0.5
    %v403 = vtanh.pop %v398
    %v405 = vrot.slane %v361, 6
    %v407 = vmul.f32 %v402, %v405
    %409 = vrot.lane.b32.xlu0 %v403, 64
    %v410 = vpop.permute.xlu0 %409
    %v412 = vmul.f32 %v402, %v410
    %414 = vrot.lane.b32.xlu0 %v412, 32
    %v415 = vpop.permute.xlu0 %414
    %v417 = vadd.f32 %v407, %v415
    %v418 = vtanh.pop %v417
    %420 = vrot.lane.b32.xlu0 %v418, 64
    %v421 = vpop.permute.xlu0 %420
    %v423 = vmul.f32 %v402, %v421
    %425 = vrot.lane.b32.xlu0 %v423, 32
    %v426 = vpop.permute.xlu0 %425
    %428 = vst.msk [vmem:[#allocation2 + $0x8] sm:$0xc] %vm195, %v426
    %v429 = vrot.slane %v423, 2
    %430 = vrot.lane.b32.xlu0 %v429, 32
    %v431 = vpop.permute.xlu0 %430
    %v432 = vsel %vm36, %v431, 0
    %434 = vmatpush.msra.mxu0 0.0
    %435 = vmatpush.msra.mxu0 0.0
    %436 = vmatpush.msra.mxu0 0.0
    %437 = vmatpush.msra.mxu0 0.0
    %438 = vmatpush.msra.mxu0 0.0
    %439 = vmatpush.msra.mxu0 0.0
    %440 = vmatpush.msra.mxu0 0.0
    %441 = vmatpush.msra.mxu0 0.0
    %442 = vmatpush.msra.mxu0 0.0
    %443 = vmatpush.msra.mxu0 0.0
    %444 = vmatpush.msra.mxu0 0.0
    %445 = vmatpush.msra.mxu0 0.0
    %446 = vmatpush.msra.mxu0 %v46
    %447 = vmatpush.msra.mxu0 %v45
    %448 = vmatpush.msra.mxu0 %v44
    %449 = vmatpush.msra.mxu0 %v43
    %450 = vmatmul.f32.gmra.mxu0 %v432
    %v451 = vpop.f32.mrf.mxu0
    %v452 = vadd.f32 0.0, %v451
    %453 = vdwg.mxu0
    %v455 = vrot.slane %v452, 4
    %v457 = vadd.f32 %v80, %v455
    %v458 = vmul.f32 %v457, 0.5
    %v459 = vtanh.pop %v458
    %v460 = vmul.f32 %v459, 0.5
    %v461 = vadd.f32 %v460, 0.5
    %v462 = vtanh.pop %v457
    %v464 = vrot.slane %v417, 6
    %v466 = vmul.f32 %v461, %v464
    %468 = vrot.lane.b32.xlu0 %v462, 64
    %v469 = vpop.permute.xlu0 %468
    %v471 = vmul.f32 %v461, %v469
    %473 = vrot.lane.b32.xlu0 %v471, 32
    %v474 = vpop.permute.xlu0 %473
    %v476 = vadd.f32 %v466, %v474
    %v477 = vtanh.pop %v476
    %479 = vrot.lane.b32.xlu0 %v477, 64
    %v480 = vpop.permute.xlu0 %479
    %v482 = vmul.f32 %v461, %v480
    %484 = vrot.lane.b32.xlu0 %v482, 32
    %v485 = vpop.permute.xlu0 %484
    %487 = vst.msk [vmem:[#allocation2 + $0x8] sm:$0x30] %vm255, %v485
    %v488 = vrot.slane %v482, 4
    %489 = vrot.lane.b32.xlu0 %v488, 32
    %v490 = vpop.permute.xlu0 %489
    %v491 = vsel %vm36, %v490, 0
    %493 = vmatpush.msra.mxu0 0.0
    %494 = vmatpush.msra.mxu0 0.0
    %495 = vmatpush.msra.mxu0 0.0
    %496 = vmatpush.msra.mxu0 0.0
    %497 = vmatpush.msra.mxu0 0.0
    %498 = vmatpush.msra.mxu0 0.0
    %499 = vmatpush.msra.mxu0 0.0
    %500 = vmatpush.msra.mxu0 0.0
    %501 = vmatpush.msra.mxu0 0.0
    %502 = vmatpush.msra.mxu0 0.0
    %503 = vmatpush.msra.mxu0 0.0
    %504 = vmatpush.msra.mxu0 0.0
    %505 = vmatpush.msra.mxu0 %v46
    %506 = vmatpush.msra.mxu0 %v45
    %507 = vmatpush.msra.mxu0 %v44
    %508 = vmatpush.msra.mxu0 %v43
    %509 = vmatmul.f32.gmra.mxu0 %v491
    %v510 = vpop.f32.mrf.mxu0
    %v511 = vadd.f32 0.0, %v510
    %512 = vdwg.mxu0
    %v514 = vrot.slane %v511, 2
    %v516 = vadd.f32 %v80, %v514
    %v517 = vmul.f32 %v516, 0.5
    %v518 = vtanh.pop %v517
    %v519 = vmul.f32 %v518, 0.5
    %v520 = vadd.f32 %v519, 0.5
    %v521 = vtanh.pop %v516
    %v523 = vrot.slane %v476, 6
    %v525 = vmul.f32 %v520, %v523
    %527 = vrot.lane.b32.xlu0 %v521, 64
    %v528 = vpop.permute.xlu0 %527
    %v530 = vmul.f32 %v520, %v528
    %532 = vrot.lane.b32.xlu0 %v530, 32
    %v533 = vpop.permute.xlu0 %532
    %v535 = vadd.f32 %v525, %v533
    %v536 = vtanh.pop %v535
    %538 = vrot.lane.b32.xlu0 %v536, 64
    %v539 = vpop.permute.xlu0 %538
    %v541 = vmul.f32 %v520, %v539
    %543 = vrot.lane.b32.xlu0 %v541, 32
    %v544 = vpop.permute.xlu0 %543
    %546 = vst.msk [vmem:[#allocation2 + $0x8] sm:$0xc0] %vm315, %v544
    %547 = vst.msk [vmem:[#allocation5 - $0x6] sm:$0xc0] %vm315, %v544
    %549 = vrot.lane.b32.xlu0 %v535, 96
    %v550 = vpop.permute.xlu0 %549
    %552 = vst.msk [vmem:[#allocation7 - $0x6] sm:$0xc0] %vm315, %v550
    %s553 = scalar_lea.vmem %s3, 32
    %v554 = vld [vmem:[%s553] sm:$0xff]
    %v555 = vld [vmem:[%s553 + $0x8] sm:$0xff]
    %v556 = vld [vmem:[%s553 + $0x10] sm:$0xff]
    %v557 = vld [vmem:[%s553 + $0x18] sm:$0xff]
    %s558 = scalar_lea.vmem %s4, 32
    %v559 = vld [vmem:[%s558] sm:$0xff]
    %v560 = vld [vmem:[%s558 + $0x8] sm:$0xff]
    %v561 = vld [vmem:[%s558 + $0x10] sm:$0xff]
    %v562 = vld [vmem:[%s558 + $0x18] sm:$0xff]
    %s563 = scalar_lea.vmem %s5, 1
    %v564 = vld [vmem:[%s563] sm:$0x1]
    %v565 = vld [vmem:[#allocation2] sm:$0xff]
    %v566 = vld [vmem:[#allocation2 + $0x8] sm:$0xff]
    %v568 = vperm.slane %v564, 0
    %v571 = vsel %vm36, %v565, 0
    %v574 = vsel %vm36, %v566, 0
    %576 = vmatpush.msra.mxu0 0.0
    %577 = vmatpush.msra.mxu0 0.0
    %578 = vmatpush.msra.mxu0 0.0
    %579 = vmatpush.msra.mxu0 0.0
    %580 = vmatpush.msra.mxu0 0.0
    %581 = vmatpush.msra.mxu0 0.0
    %582 = vmatpush.msra.mxu0 0.0
    %583 = vmatpush.msra.mxu0 0.0
    %584 = vmatpush.msra.mxu0 0.0
    %585 = vmatpush.msra.mxu0 0.0
    %586 = vmatpush.msra.mxu0 0.0
    %587 = vmatpush.msra.mxu0 0.0
    %588 = vmatpush.msra.mxu0 %v557
    %589 = vmatpush.msra.mxu0 %v556
    %590 = vmatpush.msra.mxu0 %v555
    %591 = vmatpush.msra.mxu0 %v554
    %592 = vmatmul.f32.gmra.mxu0 %v571
    %v593 = vpop.f32.mrf.mxu0
    %v594 = vadd.f32 %v568, %v593
    %595 = vmatmul.f32.gmra.mxu0 %v574
    %v596 = vpop.f32.mrf.mxu0
    %v597 = vadd.f32 %v568, %v596
    %598 = vdwg.mxu0
    %s599 = scalar_lea.vmem %s1, 2
    %v600 = vld [vmem:[%s599] sm:$0x3]
    %s601 = scalar_lea.vmem %s2, 2
    %v602 = vld [vmem:[%s601] sm:$0x3]
    %v604 = vsel %vm36, %v600, 0
    %606 = vmatpush.msra.mxu0 0.0
    %607 = vmatpush.msra.mxu0 0.0
    %608 = vmatpush.msra.mxu0 0.0
    %609 = vmatpush.msra.mxu0 0.0
    %610 = vmatpush.msra.mxu0 0.0
    %611 = vmatpush.msra.mxu0 0.0
    %612 = vmatpush.msra.mxu0 0.0
    %613 = vmatpush.msra.mxu0 0.0
    %614 = vmatpush.msra.mxu0 0.0
    %615 = vmatpush.msra.mxu0 0.0
    %616 = vmatpush.msra.mxu0 0.0
    %617 = vmatpush.msra.mxu0 0.0
    %618 = vmatpush.msra.mxu0 %v562
    %619 = vmatpush.msra.mxu0 %v561
    %620 = vmatpush.msra.mxu0 %v560
    %621 = vmatpush.msra.mxu0 %v559
    %622 = vmatmul.f32.gmra.mxu0 %v604
    %v623 = vpop.f32.mrf.mxu0
    %v624 = vadd.f32 0.0, %v623
    %625 = vdwg.mxu0
    %v626 = vadd.f32 %v594, %v624
    %v627 = vmul.f32 %v626, 0.5
    %v628 = vtanh.pop %v627
    %v629 = vmul.f32 %v628, 0.5
    %v630 = vadd.f32 %v629, 0.5
    %v631 = vtanh.pop %v626
    %633 = vrot.lane.b32.xlu0 %v602, 32
    %v634 = vpop.permute.xlu0 %633
    %v636 = vmul.f32 %v630, %v634
    %638 = vrot.lane.b32.xlu0 %v631, 64
    %v639 = vpop.permute.xlu0 %638
    %v641 = vmul.f32 %v630, %v639
    %643 = vrot.lane.b32.xlu0 %v641, 32
    %v644 = vpop.permute.xlu0 %643
    %v646 = vadd.f32 %v636, %v644
    %v647 = vtanh.pop %v646
    %649 = vrot.lane.b32.xlu0 %v647, 64
    %v650 = vpop.permute.xlu0 %649
    %v652 = vmul.f32 %v630, %v650
    %654 = vrot.lane.b32.xlu0 %v652, 32
    %v655 = vpop.permute.xlu0 %654
    %657 = vst.msk [vmem:[#allocation2] sm:$0x3] %vm138, %v655
    %v658 = vsel %vm36, %v655, 0
    %660 = vmatpush.msra.mxu0 0.0
    %661 = vmatpush.msra.mxu0 0.0
    %662 = vmatpush.msra.mxu0 0.0
    %663 = vmatpush.msra.mxu0 0.0
    %664 = vmatpush.msra.mxu0 0.0
    %665 = vmatpush.msra.mxu0 0.0
    %666 = vmatpush.msra.mxu0 0.0
    %667 = vmatpush.msra.mxu0 0.0
    %668 = vmatpush.msra.mxu0 0.0
    %669 = vmatpush.msra.mxu0 0.0
    %670 = vmatpush.msra.mxu0 0.0
    %671 = vmatpush.msra.mxu0 0.0
    %672 = vmatpush.msra.mxu0 %v562
    %673 = vmatpush.msra.mxu0 %v561
    %674 = vmatpush.msra.mxu0 %v560
    %675 = vmatpush.msra.mxu0 %v559
    %676 = vmatmul.f32.gmra.mxu0 %v658
    %v677 = vpop.f32.mrf.mxu0
    %v678 = vadd.f32 0.0, %v677
    %679 = vdwg.mxu0
    %v681 = vrot.slane %v678, 6
    %v683 = vadd.f32 %v594, %v681
    %v684 = vmul.f32 %v683, 0.5
    %v685 = vtanh.pop %v684
    %v686 = vmul.f32 %v685, 0.5
    %v687 = vadd.f32 %v686, 0.5
    %v688 = vtanh.pop %v683
    %v690 = vrot.slane %v646, 6
    %v692 = vmul.f32 %v687, %v690
    %694 = vrot.lane.b32.xlu0 %v688, 64
    %v695 = vpop.permute.xlu0 %694
    %v697 = vmul.f32 %v687, %v695
    %699 = vrot.lane.b32.xlu0 %v697, 32
    %v700 = vpop.permute.xlu0 %699
    %v702 = vadd.f32 %v692, %v700
    %v703 = vtanh.pop %v702
    %705 = vrot.lane.b32.xlu0 %v703, 64
    %v706 = vpop.permute.xlu0 %705
    %v708 = vmul.f32 %v687, %v706
    %710 = vrot.lane.b32.xlu0 %v708, 32
    %v711 = vpop.permute.xlu0 %710
    %713 = vst.msk [vmem:[#allocation2] sm:$0xc] %vm195, %v711
    %v714 = vrot.slane %v708, 2
    %715 = vrot.lane.b32.xlu0 %v714, 32
    %v716 = vpop.permute.xlu0 %715
    %v717 = vsel %vm36, %v716, 0
    %719 = vmatpush.msra.mxu0 0.0
    %720 = vmatpush.msra.mxu0 0.0
    %721 = vmatpush.msra.mxu0 0.0
    %722 = vmatpush.msra.mxu0 0.0
    %723 = vmatpush.msra.mxu0 0.0
    %724 = vmatpush.msra.mxu0 0.0
    %725 = vmatpush.msra.mxu0 0.0
    %726 = vmatpush.msra.mxu0 0.0
    %727 = vmatpush.msra.mxu0 0.0
    %728 = vmatpush.msra.mxu0 0.0
    %729 = vmatpush.msra.mxu0 0.0
    %730 = vmatpush.msra.mxu0 0.0
    %731 = vmatpush.msra.mxu0 %v562
    %732 = vmatpush.msra.mxu0 %v561
    %733 = vmatpush.msra.mxu0 %v560
    %734 = vmatpush.msra.mxu0 %v559
    %735 = vmatmul.f32.gmra.mxu0 %v717
    %v736 = vpop.f32.mrf.mxu0
    %v737 = vadd.f32 0.0, %v736
    %738 = vdwg.mxu0
    %v740 = vrot.slane %v737, 4
    %v742 = vadd.f32 %v594, %v740
    %v743 = vmul.f32 %v742, 0.5
    %v744 = vtanh.pop %v743
    %v745 = vmul.f32 %v744, 0.5
    %v746 = vadd.f32 %v745, 0.5
    %v747 = vtanh.pop %v742
    %v749 = vrot.slane %v702, 6
    %v751 = vmul.f32 %v746, %v749
    %753 = vrot.lane.b32.xlu0 %v747, 64
    %v754 = vpop.permute.xlu0 %753
    %v756 = vmul.f32 %v746, %v754
    %758 = vrot.lane.b32.xlu0 %v756, 32
    %v759 = vpop.permute.xlu0 %758
    %v761 = vadd.f32 %v751, %v759
    %v762 = vtanh.pop %v761
    %764 = vrot.lane.b32.xlu0 %v762, 64
    %v765 = vpop.permute.xlu0 %764
    %v767 = vmul.f32 %v746, %v765
    %769 = vrot.lane.b32.xlu0 %v767, 32
    %v770 = vpop.permute.xlu0 %769
    %772 = vst.msk [vmem:[#allocation2] sm:$0x30] %vm255, %v770
    %v773 = vrot.slane %v767, 4
    %774 = vrot.lane.b32.xlu0 %v773, 32
    %v775 = vpop.permute.xlu0 %774
    %v776 = vsel %vm36, %v775, 0
    %778 = vmatpush.msra.mxu0 0.0
    %779 = vmatpush.msra.mxu0 0.0
    %780 = vmatpush.msra.mxu0 0.0
    %781 = vmatpush.msra.mxu0 0.0
    %782 = vmatpush.msra.mxu0 0.0
    %783 = vmatpush.msra.mxu0 0.0
    %784 = vmatpush.msra.mxu0 0.0
    %785 = vmatpush.msra.mxu0 0.0
    %786 = vmatpush.msra.mxu0 0.0
    %787 = vmatpush.msra.mxu0 0.0
    %788 = vmatpush.msra.mxu0 0.0
    %789 = vmatpush.msra.mxu0 0.0
    %790 = vmatpush.msra.mxu0 %v562
    %791 = vmatpush.msra.mxu0 %v561
    %792 = vmatpush.msra.mxu0 %v560
    %793 = vmatpush.msra.mxu0 %v559
    %794 = vmatmul.f32.gmra.mxu0 %v776
    %v795 = vpop.f32.mrf.mxu0
    %v796 = vadd.f32 0.0, %v795
    %797 = vdwg.mxu0
    %v799 = vrot.slane %v796, 2
    %v801 = vadd.f32 %v594, %v799
    %v802 = vmul.f32 %v801, 0.5
    %v803 = vtanh.pop %v802
    %v804 = vmul.f32 %v803, 0.5
    %v805 = vadd.f32 %v804, 0.5
    %v806 = vtanh.pop %v801
    %v808 = vrot.slane %v761, 6
    %v810 = vmul.f32 %v805, %v808
    %812 = vrot.lane.b32.xlu0 %v806, 64
    %v813 = vpop.permute.xlu0 %812
    %v815 = vmul.f32 %v805, %v813
    %817 = vrot.lane.b32.xlu0 %v815, 32
    %v818 = vpop.permute.xlu0 %817
    %v820 = vadd.f32 %v810, %v818
    %v821 = vtanh.pop %v820
    %823 = vrot.lane.b32.xlu0 %v821, 64
    %v824 = vpop.permute.xlu0 %823
    %v826 = vmul.f32 %v805, %v824
    %828 = vrot.lane.b32.xlu0 %v826, 32
    %v829 = vpop.permute.xlu0 %828
    %831 = vst.msk [vmem:[#allocation2] sm:$0xc0] %vm315, %v829
    %v832 = vrot.slane %v826, 6
    %833 = vrot.lane.b32.xlu0 %v832, 32
    %v834 = vpop.permute.xlu0 %833
    %v835 = vsel %vm36, %v834, 0
    %837 = vmatpush.msra.mxu0 0.0
    %838 = vmatpush.msra.mxu0 0.0
    %839 = vmatpush.msra.mxu0 0.0
    %840 = vmatpush.msra.mxu0 0.0
    %841 = vmatpush.msra.mxu0 0.0
    %842 = vmatpush.msra.mxu0 0.0
    %843 = vmatpush.msra.mxu0 0.0
    %844 = vmatpush.msra.mxu0 0.0
    %845 = vmatpush.msra.mxu0 0.0
    %846 = vmatpush.msra.mxu0 0.0
    %847 = vmatpush.msra.mxu0 0.0
    %848 = vmatpush.msra.mxu0 0.0
    %849 = vmatpush.msra.mxu0 %v562
    %850 = vmatpush.msra.mxu0 %v561
    %851 = vmatpush.msra.mxu0 %v560
    %852 = vmatpush.msra.mxu0 %v559
    %853 = vmatmul.f32.gmra.mxu0 %v835
    %v854 = vpop.f32.mrf.mxu0
    %v855 = vadd.f32 0.0, %v854
    %856 = vdwg.mxu0
    %v857 = vadd.f32 %v597, %v855
    %v858 = vmul.f32 %v857, 0.5
    %v859 = vtanh.pop %v858
    %v860 = vmul.f32 %v859, 0.5
    %v861 = vadd.f32 %v860, 0.5
    %v862 = vtanh.pop %v857
    %v864 = vrot.slane %v820, 6
    %v866 = vmul.f32 %v861, %v864
    %868 = vrot.lane.b32.xlu0 %v862, 64
    %v869 = vpop.permute.xlu0 %868
    %v871 = vmul.f32 %v861, %v869
    %873 = vrot.lane.b32.xlu0 %v871, 32
    %v874 = vpop.permute.xlu0 %873
    %v876 = vadd.f32 %v866, %v874
    %v877 = vtanh.pop %v876
    %879 = vrot.lane.b32.xlu0 %v877, 64
    %v880 = vpop.permute.xlu0 %879
    %v882 = vmul.f32 %v861, %v880
    %884 = vrot.lane.b32.xlu0 %v882, 32
    %v885 = vpop.permute.xlu0 %884
    %887 = vst.msk [vmem:[#allocation2 + $0x8] sm:$0x3] %vm138, %v885
    %v888 = vsel %vm36, %v885, 0
    %890 = vmatpush.msra.mxu0 0.0
    %891 = vmatpush.msra.mxu0 0.0
    %892 = vmatpush.msra.mxu0 0.0
    %893 = vmatpush.msra.mxu0 0.0
    %894 = vmatpush.msra.mxu0 0.0
    %895 = vmatpush.msra.mxu0 0.0
    %896 = vmatpush.msra.mxu0 0.0
    %897 = vmatpush.msra.mxu0 0.0
    %898 = vmatpush.msra.mxu0 0.0
    %899 = vmatpush.msra.mxu0 0.0
    %900 = vmatpush.msra.mxu0 0.0
    %901 = vmatpush.msra.mxu0 0.0
    %902 = vmatpush.msra.mxu0 %v562
    %903 = vmatpush.msra.mxu0 %v561
    %904 = vmatpush.msra.mxu0 %v560
    %905 = vmatpush.msra.mxu0 %v559
    %906 = vmatmul.f32.gmra.mxu0 %v888
    %v907 = vpop.f32.mrf.mxu0
    %v908 = vadd.f32 0.0, %v907
    %909 = vdwg.mxu0
    %v911 = vrot.slane %v908, 6
    %v913 = vadd.f32 %v597, %v911
    %v914 = vmul.f32 %v913, 0.5
    %v915 = vtanh.pop %v914
    %v916 = vmul.f32 %v915, 0.5
    %v917 = vadd.f32 %v916, 0.5
    %v918 = vtanh.pop %v913
    %v920 = vrot.slane %v876, 6
    %v922 = vmul.f32 %v917, %v920
    %924 = vrot.lane.b32.xlu0 %v918, 64
    %v925 = vpop.permute.xlu0 %924
    %v927 = vmul.f32 %v917, %v925
    %929 = vrot.lane.b32.xlu0 %v927, 32
    %v930 = vpop.permute.xlu0 %929
    %v932 = vadd.f32 %v922, %v930
    %v933 = vtanh.pop %v932
    %935 = vrot.lane.b32.xlu0 %v933, 64
    %v936 = vpop.permute.xlu0 %935
    %v938 = vmul.f32 %v917, %v936
    %940 = vrot.lane.b32.xlu0 %v938, 32
    %v941 = vpop.permute.xlu0 %940
    %943 = vst.msk [vmem:[#allocation2 + $0x8] sm:$0xc] %vm195, %v941
    %v944 = vrot.slane %v938, 2
    %945 = vrot.lane.b32.xlu0 %v944, 32
    %v946 = vpop.permute.xlu0 %945
    %v947 = vsel %vm36, %v946, 0
    %949 = vmatpush.msra.mxu0 0.0
    %950 = vmatpush.msra.mxu0 0.0
    %951 = vmatpush.msra.mxu0 0.0
    %952 = vmatpush.msra.mxu0 0.0
    %953 = vmatpush.msra.mxu0 0.0
    %954 = vmatpush.msra.mxu0 0.0
    %955 = vmatpush.msra.mxu0 0.0
    %956 = vmatpush.msra.mxu0 0.0
    %957 = vmatpush.msra.mxu0 0.0
    %958 = vmatpush.msra.mxu0 0.0
    %959 = vmatpush.msra.mxu0 0.0
    %960 = vmatpush.msra.mxu0 0.0
    %961 = vmatpush.msra.mxu0 %v562
    %962 = vmatpush.msra.mxu0 %v561
    %963 = vmatpush.msra.mxu0 %v560
    %964 = vmatpush.msra.mxu0 %v559
    %965 = vmatmul.f32.gmra.mxu0 %v947
    %v966 = vpop.f32.mrf.mxu0
    %v967 = vadd.f32 0.0, %v966
    %968 = vdwg.mxu0
    %v970 = vrot.slane %v967, 4
    %v972 = vadd.f32 %v597, %v970
    %v973 = vmul.f32 %v972, 0.5
    %v974 = vtanh.pop %v973
    %v975 = vmul.f32 %v974, 0.5
    %v976 = vadd.f32 %v975, 0.5
    %v977 = vtanh.pop %v972
    %v979 = vrot.slane %v932, 6
    %v981 = vmul.f32 %v976, %v979
    %983 = vrot.lane.b32.xlu0 %v977, 64
    %v984 = vpop.permute.xlu0 %983
    %v986 = vmul.f32 %v976, %v984
    %988 = vrot.lane.b32.xlu0 %v986, 32
    %v989 = vpop.permute.xlu0 %988
    %v991 = vadd.f32 %v981, %v989
    %v992 = vtanh.pop %v991
    %994 = vrot.lane.b32.xlu0 %v992, 64
    %v995 = vpop.permute.xlu0 %994
    %v997 = vmul.f32 %v976, %v995
    %999 = vrot.lane.b32.xlu0 %v997, 32
    %v1000 = vpop.permute.xlu0 %999
    %1002 = vst.msk [vmem:[#allocation2 + $0x8] sm:$0x30] %vm255, %v1000
    %v1003 = vrot.slane %v997, 4
    %1004 = vrot.lane.b32.xlu0 %v1003, 32
    %v1005 = vpop.permute.xlu0 %1004
    %v1006 = vsel %vm36, %v1005, 0
    %1008 = vmatpush.msra.mxu0 0.0
    %1009 = vmatpush.msra.mxu0 0.0
    %1010 = vmatpush.msra.mxu0 0.0
    %1011 = vmatpush.msra.mxu0 0.0
    %1012 = vmatpush.msra.mxu0 0.0
    %1013 = vmatpush.msra.mxu0 0.0
    %1014 = vmatpush.msra.mxu0 0.0
    %1015 = vmatpush.msra.mxu0 0.0
    %1016 = vmatpush.msra.mxu0 0.0
    %1017 = vmatpush.msra.mxu0 0.0
    %1018 = vmatpush.msra.mxu0 0.0
    %1019 = vmatpush.msra.mxu0 0.0
    %1020 = vmatpush.msra.mxu0 %v562
    %1021 = vmatpush.msra.mxu0 %v561
    %1022 = vmatpush.msra.mxu0 %v560
    %1023 = vmatpush.msra.mxu0 %v559
    %1024 = vmatmul.f32.gmra.mxu0 %v1006
    %v1025 = vpop.f32.mrf.mxu0
    %v1026 = vadd.f32 0.0, %v1025
    %1027 = vdwg.mxu0
    %v1029 = vrot.slane %v1026, 2
    %v1031 = vadd.f32 %v597, %v1029
    %v1032 = vmul.f32 %v1031, 0.5
    %v1033 = vtanh.pop %v1032
    %v1034 = vmul.f32 %v1033, 0.5
    %v1035 = vadd.f32 %v1034, 0.5
    %v1036 = vtanh.pop %v1031
    %v1038 = vrot.slane %v991, 6
    %v1040 = vmul.f32 %v1035, %v1038
    %1042 = vrot.lane.b32.xlu0 %v1036, 64
    %v1043 = vpop.permute.xlu0 %1042
    %v1045 = vmul.f32 %v1035, %v1043
    %1047 = vrot.lane.b32.xlu0 %v1045, 32
    %v1048 = vpop.permute.xlu0 %1047
    %v1050 = vadd.f32 %v1040, %v1048
    %v1051 = vtanh.pop %v1050
    %1053 = vrot.lane.b32.xlu0 %v1051, 64
    %v1054 = vpop.permute.xlu0 %1053
    %v1056 = vmul.f32 %v1035, %v1054
    %1058 = vrot.lane.b32.xlu0 %v1056, 32
    %v1059 = vpop.permute.xlu0 %1058
    %1061 = vst.msk [vmem:[#allocation2 + $0x8] sm:$0xc0] %vm315, %v1059
    %s1062 = scalar_lea.vmem [#allocation5], 2
    %1063 = vst.msk [vmem:[%s1062 - $0x6] sm:$0xc0] %vm315, %v1059
    %1065 = vrot.lane.b32.xlu0 %v1050, 96
    %v1066 = vpop.permute.xlu0 %1065
    %s1068 = scalar_lea.vmem [#allocation7], 2
    %1069 = vst.msk [vmem:[%s1068 - $0x6] sm:$0xc0] %vm315, %v1066
    %v1070 = vld [vmem:[#allocation2] sm:$0xff]
    %v1071 = vld [vmem:[#allocation2 + $0x8] sm:$0xff]
    %v1072 = vld [vmem:[%s6] sm:$0xff]
    %v1073 = vld [vmem:[%s6 + $0x8] sm:$0xff]
    %v1074 = vld [vmem:[%s6 + $0x10] sm:$0xff]
    %v1075 = vld [vmem:[%s6 + $0x18] sm:$0xff]
    %v1076 = vld [vmem:[%s7] sm:$0x1]
    %v1078 = vperm.slane %v1076, 0
    %v1081 = vsel %vm36, %v1070, 0
    %v1084 = vsel %vm36, %v1071, 0
    %1086 = vmatpush.msra.mxu0 0.0
    %1087 = vmatpush.msra.mxu0 0.0
    %1088 = vmatpush.msra.mxu0 0.0
    %1089 = vmatpush.msra.mxu0 0.0
    %1090 = vmatpush.msra.mxu0 0.0
    %1091 = vmatpush.msra.mxu0 0.0
    %1092 = vmatpush.msra.mxu0 0.0
    %1093 = vmatpush.msra.mxu0 0.0
    %1094 = vmatpush.msra.mxu0 0.0
    %1095 = vmatpush.msra.mxu0 0.0
    %1096 = vmatpush.msra.mxu0 0.0
    %1097 = vmatpush.msra.mxu0 0.0
    %1098 = vmatpush.msra.mxu0 %v1075
    %1099 = vmatpush.msra.mxu0 %v1074
    %1100 = vmatpush.msra.mxu0 %v1073
    %1101 = vmatpush.msra.mxu0 %v1072
    %1102 = vmatmul.f32.gmra.mxu0 %v1081
    %v1103 = vpop.f32.mrf.mxu0
    %v1104 = vadd.f32 %v1078, %v1103
    %1105 = vmatmul.f32.gmra.mxu0 %v1084
    %v1106 = vpop.f32.mrf.mxu0
    %v1107 = vadd.f32 %v1078, %v1106
    %1108 = vdwg.mxu0
    %1109 = vst [vmem:[#allocation3] sm:$0xff] %v1104
    %1110 = vst [vmem:[#allocation3 + $0x8] sm:$0xff] %v1107
    // Predicated region
    $region34: #{rnn_model_forward.1} parent=1 // pred_check
      _
    $region35: #{rnn_model_forward.1} parent=1 // pred_check_branch
      %1112 = sbr.rel (0) target = $region37
    $region36: #{rnn_model_forward.1} parent=1 // pred_region
      %1114 = vsyncadd [#allocation4], 0
      %s1115 = sshll.u32 [#allocation3], 4
      %s1116 = int_to_ptr.vmem [resolvable:$true] %s1115
      %s1117 = sshll.u32 %s8, 4
      %s1118 = int_to_ptr.hbm [resolvable:$true] %s1117
      %1123 = dma.vmem_to_hbm [thread:$0]  %s1116, 256, %s1118, [#allocation4], 128, 128, 8
    $region37: #{rnn_model_forward.1} parent=1 // pred_fallthru
      _
    // Predicated region
    $region38: #{rnn_model_forward.1} parent=1 // pred_check
      _
    $region39: #{rnn_model_forward.1} parent=1 // pred_check_branch
      %1125 = sbr.rel (0) target = $region41
    $region40: #{rnn_model_forward.1} parent=1 // pred_region
      %1127 = vsyncadd [#allocation6], 0
      %s1128 = sshll.u32 [#allocation5], 4
      %s1129 = int_to_ptr.vmem [resolvable:$true] %s1128
      %s1130 = sshll.u32 %s9, 4
      %s1131 = int_to_ptr.hbm [resolvable:$true] %s1130
      %1136 = dma.vmem_to_hbm [thread:$0]  %s1129, 64, %s1131, [#allocation6], 32, 32, 2
    $region41: #{rnn_model_forward.1} parent=1 // pred_fallthru
      _
    // Predicated region
    $region42: #{rnn_model_forward.1} parent=1 // pred_check
      _
    $region43: #{rnn_model_forward.1} parent=1 // pred_check_branch
      %1138 = sbr.rel (0) target = $region45
    $region44: #{rnn_model_forward.1} parent=1 // pred_region
      %1140 = vsyncadd [#allocation6], 0
      %s1141 = sshll.u32 [#allocation7], 4
      %s1142 = int_to_ptr.vmem [resolvable:$true] %s1141
      %s1143 = sshll.u32 %s10, 4
      %s1144 = int_to_ptr.hbm [resolvable:$true] %s1143
      %1149 = dma.vmem_to_hbm [thread:$0]  %s1142, 64, %s1144, [#allocation6], 32, 32, 2
    $region45: #{rnn_model_forward.1} parent=1 // pred_fallthru
      _
    // Predicated region
    $region46: #{rnn_model_forward.1} parent=1 // pred_check
      _
    $region47: #{rnn_model_forward.1} parent=1 // pred_check_branch
      %1151 = sbr.rel (0) target = $region49
    $region48: #{rnn_model_forward.1} parent=1 // pred_region
      %1153 = dma.done [#allocation4], 256
    $region49: #{rnn_model_forward.1} parent=1 // pred_fallthru
      _
    // Predicated region
    $region50: #{rnn_model_forward.1} parent=1 // pred_check
      _
    $region51: #{rnn_model_forward.1} parent=1 // pred_check_branch
      %1155 = sbr.rel (0) target = $region53
    $region52: #{rnn_model_forward.1} parent=1 // pred_region
      %1157 = dma.done [#allocation6], 64
    $region53: #{rnn_model_forward.1} parent=1 // pred_fallthru
      _
    // Predicated region
    $region54: #{rnn_model_forward.1} parent=1 // pred_check
      _
    $region55: #{rnn_model_forward.1} parent=1 // pred_check_branch
      %1159 = sbr.rel (0) target = $region57
    $region56: #{rnn_model_forward.1} parent=1 // pred_region
      %1161 = dma.done [#allocation6], 64
    $region57: #{rnn_model_forward.1} parent=1 // pred_fallthru
      _
    %1162 = vsyncpa [#allocation4], 1
    %1163 = vsyncpa [#allocation6], 1

</llo_original>
